<compile_context>
chip_gen: v7x
topology: tpu7x:2x2x1
jax: 0.10.0
libtpu: 0.0.40
codegen_flags: <defaults>
</compile_context>

<pallas_src>
import functools

import jax
import jax.numpy as jnp
from jax import lax
from jax.experimental import pallas as pl
from jax.experimental.pallas import tpu as pltpu


def _round_up(x, m):
    return ((x + m - 1) // m) * m


def _lstm_recurrent_kernel(xw_ref, idx_ref, whh_ref, h0_ref, c0_ref, out_ref,
                           h_scr, c_scr, *, hidden_size, t_chunk, act_dtype):
    """One T-chunk of the serial LSTM recurrence for one batch tile.

    Grid = (batch_tiles, time_chunks); time is the inner ("arbitrary") axis, so the h/c
    carry persists in VMEM scratch across chunks while xw is streamed chunk by chunk.

    xw_ref : (T_CHUNK, Bt, 4*Hp)  bf16/f32  x @ W_ih^T + (b_ih + b_hh), gate-padded
    idx_ref: (Bt, 1)              i32       last valid step per row (-1 for padded rows)
    whh_ref: (Hp, 4*Hp)           bf16/f32  hidden->gates weights, gate-padded
    h0_ref / c0_ref : (Bt, Hp)    f32       initial state
    out_ref: (Bt, Hp)             f32       latched final hidden state (resident across chunks)
    h_scr / c_scr : (Bt, Hp)      f32       cross-chunk recurrent carry
    """
    Hp = hidden_size
    f32 = jnp.float32
    t_blk = pl.program_id(1)

    @pl.when(t_blk == 0)
    def _():
        h_scr[...] = h0_ref[...]
        c_scr[...] = c0_ref[...]
        out_ref[...] = jnp.zeros_like(out_ref)

    # Loop-invariant work hoisted out of the step loop (JAX does not CSE broadcasts).
    last_idx = jnp.broadcast_to(idx_ref[...], out_ref.shape)          # (Bt, Hp) i32
    t_base = t_blk * t_chunk

    def step(t, carry):
        h_prev, c_prev, out = carry                                   # f32 loop carry
        # Only the recurrent matmul is inside the loop (bf16 operands, f32 accumulate).
        gates = (xw_ref[t].astype(f32)
                 + jnp.dot(h_prev.astype(whh_ref.dtype), whh_ref[...],
                           preferred_element_type=f32))               # (Bt, 4*Hp) f32

        i_g = jax.nn.sigmoid(gates[:, 0 * Hp:1 * Hp].astype(act_dtype))
        f_g = jax.nn.sigmoid(gates[:, 1 * Hp:2 * Hp].astype(act_dtype))
        g_g = jnp.tanh(gates[:, 2 * Hp:3 * Hp].astype(act_dtype))
        o_g = jax.nn.sigmoid(gates[:, 3 * Hp:4 * Hp].astype(act_dtype))

        c_new = f_g.astype(f32) * c_prev + i_g.astype(f32) * g_g.astype(f32)
        h_new = o_g.astype(f32) * jnp.tanh(c_new.astype(act_dtype)).astype(f32)

        # Latch h at the last valid step of each row (padded rows have idx == -1).
        out = jnp.where(last_idx == t_base + t, h_new, out)
        return h_new, c_new, out

    h, c, out = lax.fori_loop(
        0, t_chunk, step, (h_scr[...], c_scr[...], out_ref[...]), unroll=True)

    # One store per chunk for each of carry / latch (no per-step VMEM round trips).
    h_scr[...] = h
    c_scr[...] = c
    out_ref[...] = out


def rnn_encoder_forward(inputs, input_len, params, initial_state,
                        matmul_dtype=jnp.bfloat16, act_dtype=None, t_chunk=None):
    """inputs: (B, T, D) f32, input_len: (B,) i32, initial_state: (h0, c0) each (B, H)."""
    B, T, D = inputs.shape
    w_ih, w_hh, b_ih, b_hh = params               # (4H, D), (4H, H), (4H,), (4H,)
    H = w_hh.shape[1]
    h0, c0 = initial_state
    f32 = jnp.float32

    exact = jnp.dtype(matmul_dtype) == jnp.dtype(jnp.float32)
    if act_dtype is None:
        act_dtype = f32 if exact else jnp.bfloat16
    xw_dtype = f32 if exact else jnp.bfloat16     # bf16 stream halves VMEM + DMA bytes

    # ---- hardware-friendly padding: H -> lane multiple (128), B -> sublane multiple.
    Hp = _round_up(H, 128)
    Bp = _round_up(B, 8)
    if Bp > 64:
        # <= 64 rows keeps the f32 (h, c, out) loop carry within the vreg budget.
        B_TILE = 64
        Bp = _round_up(Bp, B_TILE)
    else:
        B_TILE = Bp
    nb = Bp // B_TILE

    # ---- time-chunk streaming: bounds VMEM regardless of T.
    if t_chunk is None:
        t_chunk = min(T, 8)
    Tp = _round_up(T, t_chunk)
    nt = Tp // t_chunk

    # ---- hoisted input projection.  Transpose the tiny raw (B, T, 2) input first and
    # project with gate-strided pre-padded weights so xw comes out directly as
    # (Tp, Bp, 4*Hp) — no transpose / scatter of the big projected slab.
    x_t = jnp.transpose(inputs.astype(f32), (1, 0, 2))                 # (T, B, D)
    x_tp = jnp.zeros((Tp, Bp, D), f32).at[:T, :B, :].set(x_t)
    w_ih_p = (jnp.zeros((D, 4, Hp), f32)
              .at[:, :, :H].set(jnp.transpose(w_ih).astype(f32).reshape(D, 4, H))
              .reshape(D, 4 * Hp))
    bias_p = (jnp.zeros((4, Hp), f32)
              .at[:, :H].set((b_ih + b_hh).astype(f32).reshape(4, H))
              .reshape(4 * Hp))
    xw = (x_tp.reshape(Tp * Bp, D) @ w_ih_p + bias_p).reshape(Tp, Bp, 4 * Hp)
    xw = xw.astype(xw_dtype)                                           # gate g starts at g*Hp

    # ---- recurrent weights, padded so every gate block is 128-lane aligned.
    whh_p = (jnp.zeros((Hp, 4, Hp), f32)
             .at[:H, :, :H].set(jnp.transpose(w_hh).astype(f32).reshape(H, 4, H))
             .reshape(Hp, 4 * Hp).astype(matmul_dtype))

    # ---- state / latch-index padding (padded lanes/rows stay exactly zero).
    h0_p = jnp.zeros((Bp, Hp), f32).at[:B, :H].set(h0.astype(f32))
    c0_p = jnp.zeros((Bp, Hp), f32).at[:B, :H].set(c0.astype(f32))
    lens = input_len.astype(jnp.int32)
    last_idx = jnp.where(lens > 0, lens - 1, T - 1)   # PyTorch outputs[v-1]; v==0 -> last step
    idx_p = jnp.full((Bp, 1), -1, jnp.int32).at[:B, 0].set(last_idx)

    kernel = functools.partial(_lstm_recurrent_kernel, hidden_size=Hp,
                               t_chunk=t_chunk, act_dtype=act_dtype)

    # ---- exact double-buffer VMEM accounting (+headroom), clamped below v7x's 64 MiB.
    itm_x = jnp.dtype(xw_dtype).itemsize
    itm_w = jnp.dtype(matmul_dtype).itemsize
    est = (2 * t_chunk * B_TILE * 4 * Hp * itm_x      # xw chunk, double buffered
           + 2 * Hp * 4 * Hp * itm_w                  # W_hh (replicated)
           + 2 * 2 * B_TILE * Hp * 4                  # h0 / c0
           + 2 * B_TILE * 128 * 4                     # idx (lane padded)
           + 2 * B_TILE * Hp * 4                      # output block
           + 2 * B_TILE * Hp * 4)                     # h / c scratch
    vmem_limit = int(min(max(int(est * 1.25) + (8 << 20), 32 << 20), 56 << 20))

    grid_spec = pltpu.PrefetchScalarGridSpec(
        num_scalar_prefetch=0,
        grid=(nb, nt),                                # batch tiles parallel, time sequential
        in_specs=[
            pl.BlockSpec((t_chunk, B_TILE, 4 * Hp), lambda b, t: (t, b, 0)),   # xw (streamed)
            pl.BlockSpec((B_TILE, 1), lambda b, t: (b, 0)),                    # last-step index
            pl.BlockSpec((Hp, 4 * Hp), lambda b, t: (0, 0)),                   # W_hh
            pl.BlockSpec((B_TILE, Hp), lambda b, t: (b, 0)),                   # h0
            pl.BlockSpec((B_TILE, Hp), lambda b, t: (b, 0)),                   # c0
        ],
        out_specs=pl.BlockSpec((B_TILE, Hp), lambda b, t: (b, 0)),
        scratch_shapes=[pltpu.VMEM((B_TILE, Hp), f32),   # h carry across chunks
                        pltpu.VMEM((B_TILE, Hp), f32)],  # c carry across chunks
    )

    out_p = pl.pallas_call(
        kernel,
        out_shape=jax.ShapeDtypeStruct((Bp, Hp), f32),
        grid_spec=grid_spec,
        compiler_params=pltpu.CompilerParams(
            dimension_semantics=("parallel", "arbitrary"),
            vmem_limit_bytes=vmem_limit),
    )(xw, idx_p, whh_p, h0_p, c0_p)

    return out_p[:B, :H]


def _reference_forward(inputs, input_len, params, initial_state):
    """Pure-JAX reference mirroring the PyTorch loop, for correctness checking."""
    w_ih, w_hh, b_ih, b_hh = params
    H = w_hh.shape[1]
    h, c = initial_state

    def cell(carry, x_t):
        h, c = carry
        gates = x_t @ w_ih.T + b_ih + h @ w_hh.T + b_hh
        i = jax.nn.sigmoid(gates[:, 0 * H:1 * H])
        f = jax.nn.sigmoid(gates[:, 1 * H:2 * H])
        g = jnp.tanh(gates[:, 2 * H:3 * H])
        o = jax.nn.sigmoid(gates[:, 3 * H:4 * H])
        c_new = f * c + i * g
        h_new = o * jnp.tanh(c_new)
        return (h_new, c_new), h_new

    xs = jnp.transpose(inputs, (1, 0, 2))            # (T, B, D)
    _, hs = lax.scan(cell, (h, c), xs)               # (T, B, H)
    idx = input_len - 1                              # len==0 -> -1 -> last step (PyTorch outputs[-1])
    return hs[idx, jnp.arange(inputs.shape[0]), :]   # (B, H)


if __name__ == "__main__":
    B, T, D, H = 2, 8, 2, 32

    key = jax.random.PRNGKey(0)
    k_x, k_wih, k_whh, k_bih, k_bhh = jax.random.split(key, 5)

    inputs = jax.random.normal(k_x, (B, T, D), dtype=jnp.float32)
    input_len = jnp.array([T, 5], dtype=jnp.int32)          # valid lengths per batch row

    bound = 1.0 / float(H) ** 0.5                           # PyTorch LSTMCell default init range
    w_ih = jax.random.uniform(k_wih, (4 * H, D), jnp.float32, -bound, bound)
    w_hh = jax.random.uniform(k_whh, (4 * H, H), jnp.float32, -bound, bound)
    b_ih = jax.random.uniform(k_bih, (4 * H,), jnp.float32, -bound, bound)
    b_hh = jax.random.uniform(k_bhh, (4 * H,), jnp.float32, -bound, bound)
    params = (w_ih, w_hh, b_ih, b_hh)

    h0 = jnp.zeros((B, H), jnp.float32)
    c0 = jnp.zeros((B, H), jnp.float32)

    ref = _reference_forward(inputs, input_len, params, (h0, c0))

    # Exact-mode check (f32 matmul operands, f32 nonlinearities): validates kernel logic.
    out_f32 = jax.block_until_ready(
        rnn_encoder_forward(inputs, input_len, params, (h0, c0), matmul_dtype=jnp.float32))
    assert out_f32.shape == (B, H)
    assert jnp.allclose(out_f32, ref, atol=1e-4, rtol=1e-4), "f32 path mismatch vs reference"

    # Default fast path (bf16 xw / W_hh / nonlinearities, f32 recurrent state + accumulation).
    out_bf16 = jax.block_until_ready(
        rnn_encoder_forward(inputs, input_len, params, (h0, c0)))
    assert out_bf16.shape == (B, H)
    assert jnp.allclose(out_bf16, ref, atol=5e-2, rtol=5e-2), "bf16 path mismatch vs reference"

    # Also exercise multi-chunk streaming (t_chunk < T) to cover the cross-chunk carry path.
    out_chunked = jax.block_until_ready(
        rnn_encoder_forward(inputs, input_len, params, (h0, c0),
                            matmul_dtype=jnp.float32, t_chunk=4))
    assert jnp.allclose(out_chunked, ref, atol=1e-4, rtol=1e-4), "chunked path mismatch"

    print("KERNEL_OK")
</pallas_src>

<mosaic_0001>
module attributes {stable_mosaic.version = 11 : i64} {
  func.func @_lstm_recurrent_kernel(%arg0: i32, %arg1: i32, %arg2: memref<8x8x512xf32, #tpu.memory_space<vmem>>, %arg3: memref<8x1xi32, #tpu.memory_space<vmem>>, %arg4: memref<128x512xf32, #tpu.memory_space<vmem>>, %arg5: memref<8x128xf32, #tpu.memory_space<vmem>>, %arg6: memref<8x128xf32, #tpu.memory_space<vmem>>, %arg7: memref<8x128xf32, #tpu.memory_space<vmem>>, %arg8: memref<8x128xf32, #tpu.memory_space<vmem>>, %arg9: memref<8x128xf32, #tpu.memory_space<vmem>>) attributes {dimension_semantics = [#tpu.dimension_semantics<parallel>, #tpu.dimension_semantics<arbitrary>], iteration_bounds = array<i64: 1, 1>, scalar_prefetch = 0 : i64, scratch_operands = 2 : i64, tpu.core_type = #tpu.core_type<tc>, window_params = [{transform_indices = @transform_0, window_bounds = array<i64: 8, 8, 512>}, {transform_indices = @transform_1, window_bounds = array<i64: 8, 1>}, {pipeline_mode = #tpu.pipeline_mode<synchronous>, transform_indices = @transform_2, window_bounds = array<i64: 128, 512>}, {transform_indices = @transform_3, window_bounds = array<i64: 8, 128>}, {transform_indices = @transform_4, window_bounds = array<i64: 8, 128>}, {transform_indices = @transform_5, window_bounds = array<i64: 8, 128>}]} {
    %c0_i32 = arith.constant 0 : i32
    %0 = arith.cmpi eq, %arg1, %c0_i32 : i32
    %1 = arith.extui %0 : i1 to i32
    %c0_i32_0 = arith.constant 0 : i32
    %2 = arith.cmpi ne, %1, %c0_i32_0 : i32
    scf.if %2 {
      %c0_79 = arith.constant 0 : index
      %c0_80 = arith.constant 0 : index
      %293 = vector.load %arg5[%c0_79, %c0_80] : memref<8x128xf32, #tpu.memory_space<vmem>>, vector<8x128xf32>
      %c0_81 = arith.constant 0 : index
      %c0_82 = arith.constant 0 : index
      %294 = vector.load %arg8[%c0_81, %c0_82] : memref<8x128xf32, #tpu.memory_space<vmem>>, vector<8x128xf32>
      tpu.vector_store %arg8[%c0_81, %c0_82], %293 {strides = array<i32>} : memref<8x128xf32, #tpu.memory_space<vmem>>, vector<8x128xf32>,
      %c0_83 = arith.constant 0 : index
      %c0_84 = arith.constant 0 : index
      %295 = vector.load %arg6[%c0_83, %c0_84] : memref<8x128xf32, #tpu.memory_space<vmem>>, vector<8x128xf32>
      %c0_85 = arith.constant 0 : index
      %c0_86 = arith.constant 0 : index
      %296 = vector.load %arg9[%c0_85, %c0_86] : memref<8x128xf32, #tpu.memory_space<vmem>>, vector<8x128xf32>
      tpu.vector_store %arg9[%c0_85, %c0_86], %295 {strides = array<i32>} : memref<8x128xf32, #tpu.memory_space<vmem>>, vector<8x128xf32>,
      %cst_87 = arith.constant 0.000000e+00 : f32
      %297 = vector.broadcast %cst_87 : f32 to vector<8x128xf32>
      %c0_88 = arith.constant 0 : index
      %c0_89 = arith.constant 0 : index
      %298 = vector.load %arg7[%c0_88, %c0_89] : memref<8x128xf32, #tpu.memory_space<vmem>>, vector<8x128xf32>
      tpu.vector_store %arg7[%c0_88, %c0_89], %297 {strides = array<i32>} : memref<8x128xf32, #tpu.memory_space<vmem>>, vector<8x128xf32>,
    } else {
    }
    %c0 = arith.constant 0 : index
    %c0_1 = arith.constant 0 : index
    %3 = vector.load %arg3[%c0, %c0_1] : memref<8x1xi32, #tpu.memory_space<vmem>>, vector<8x1xi32>
    %4 = vector.shape_cast %3 : vector<8x1xi32> to vector<8x1xi32>
    %5 = vector.broadcast %4 : vector<8x1xi32> to vector<8x128xi32>
    %c8_i32 = arith.constant 8 : i32
    %6 = arith.muli %arg1, %c8_i32 : i32
    %c0_2 = arith.constant 0 : index
    %c0_3 = arith.constant 0 : index
    %7 = vector.load %arg8[%c0_2, %c0_3] : memref<8x128xf32, #tpu.memory_space<vmem>>, vector<8x128xf32>
    %c0_4 = arith.constant 0 : index
    %c0_5 = arith.constant 0 : index
    %8 = vector.load %arg9[%c0_4, %c0_5] : memref<8x128xf32, #tpu.memory_space<vmem>>, vector<8x128xf32>
    %c0_6 = arith.constant 0 : index
    %c0_7 = arith.constant 0 : index
    %9 = vector.load %arg7[%c0_6, %c0_7] : memref<8x128xf32, #tpu.memory_space<vmem>>, vector<8x128xf32>
    %c0_i32_8 = arith.constant 0 : i32
    %10 = arith.index_cast %c0_i32_8 : i32 to index
    %c0_9 = arith.constant 0 : index
    %c0_10 = arith.constant 0 : index
    %11 = vector.load %arg2[%10, %c0_9, %c0_10] : memref<8x8x512xf32, #tpu.memory_space<vmem>>, vector<1x8x512xf32>
    %12 = vector.shape_cast %11 : vector<1x8x512xf32> to vector<8x512xf32>
    %c0_11 = arith.constant 0 : index
    %c0_12 = arith.constant 0 : index
    %13 = vector.load %arg4[%c0_11, %c0_12] : memref<128x512xf32, #tpu.memory_space<vmem>>, vector<128x512xf32>
    %cst = arith.constant dense<0.000000e+00> : vector<8x512xf32>
    %14 = tpu.matmul %7, %13, %cst {dimension_numbers = #tpu.dot_dimension_numbers<[1], [0], [0], [1], [0, 0, 1, 1], [], []>} : vector<8x128xf32>, vector<128x512xf32>, vector<8x512xf32> -> vector<8x512xf32>
    %15 = arith.addf %12, %14 : vector<8x512xf32>
    %16 = vector.extract_strided_slice %15 {offsets = [0, 0], sizes = [8, 128], strides = [1, 1]} : vector<8x512xf32> to vector<8x128xf32>
    %17 = arith.negf %16 : vector<8x128xf32>
    %18 = math.exp %17 : vector<8x128xf32>
    %cst_13 = arith.constant 1.000000e+00 : f32
    %19 = vector.broadcast %cst_13 : f32 to vector<8x128xf32>
    %20 = arith.addf %19, %18 : vector<8x128xf32>
    %21 = arith.divf %19, %20 : vector<8x128xf32>
    %22 = vector.extract_strided_slice %15 {offsets = [0, 128], sizes = [8, 128], strides = [1, 1]} : vector<8x512xf32> to vector<8x128xf32>
    %23 = arith.negf %22 : vector<8x128xf32>
    %24 = math.exp %23 : vector<8x128xf32>
    %cst_14 = arith.constant 1.000000e+00 : f32
    %25 = vector.broadcast %cst_14 : f32 to vector<8x128xf32>
    %26 = arith.addf %25, %24 : vector<8x128xf32>
    %27 = arith.divf %25, %26 : vector<8x128xf32>
    %28 = vector.extract_strided_slice %15 {offsets = [0, 256], sizes = [8, 128], strides = [1, 1]} : vector<8x512xf32> to vector<8x128xf32>
    %29 = math.tanh %28 : vector<8x128xf32>
    %30 = vector.extract_strided_slice %15 {offsets = [0, 384], sizes = [8, 128], strides = [1, 1]} : vector<8x512xf32> to vector<8x128xf32>
    %31 = arith.negf %30 : vector<8x128xf32>
    %32 = math.exp %31 : vector<8x128xf32>
    %cst_15 = arith.constant 1.000000e+00 : f32
    %33 = vector.broadcast %cst_15 : f32 to vector<8x128xf32>
    %34 = arith.addf %33, %32 : vector<8x128xf32>
    %35 = arith.divf %33, %34 : vector<8x128xf32>
    %36 = arith.mulf %27, %8 : vector<8x128xf32>
    %37 = arith.mulf %21, %29 : vector<8x128xf32>
    %38 = arith.addf %36, %37 : vector<8x128xf32>
    %39 = math.tanh %38 : vector<8x128xf32>
    %40 = arith.mulf %35, %39 : vector<8x128xf32>
    %41 = arith.addi %6, %c0_i32_8 : i32
    %42 = vector.broadcast %41 : i32 to vector<8x128xi32>
    %43 = arith.cmpi eq, %5, %42 : vector<8x128xi32>
    %44 = arith.select %43, %40, %9 : vector<8x128xi1>, vector<8x128xf32>
    %c1_i32 = arith.constant 1 : i32
    %45 = arith.index_cast %c1_i32 : i32 to index
    %c0_16 = arith.constant 0 : index
    %c0_17 = arith.constant 0 : index
    %46 = vector.load %arg2[%45, %c0_16, %c0_17] : memref<8x8x512xf32, #tpu.memory_space<vmem>>, vector<1x8x512xf32>
    %47 = vector.shape_cast %46 : vector<1x8x512xf32> to vector<8x512xf32>
    %c0_18 = arith.constant 0 : index
    %c0_19 = arith.constant 0 : index
    %48 = vector.load %arg4[%c0_18, %c0_19] : memref<128x512xf32, #tpu.memory_space<vmem>>, vector<128x512xf32>
    %cst_20 = arith.constant dense<0.000000e+00> : vector<8x512xf32>
    %49 = tpu.matmul %40, %48, %cst_20 {dimension_numbers = #tpu.dot_dimension_numbers<[1], [0], [0], [1], [0, 0, 1, 1], [], []>} : vector<8x128xf32>, vector<128x512xf32>, vector<8x512xf32> -> vector<8x512xf32>
    %50 = arith.addf %47, %49 : vector<8x512xf32>
    %51 = vector.extract_strided_slice %50 {offsets = [0, 0], sizes = [8, 128], strides = [1, 1]} : vector<8x512xf32> to vector<8x128xf32>
    %52 = arith.negf %51 : vector<8x128xf32>
    %53 = math.exp %52 : vector<8x128xf32>
    %cst_21 = arith.constant 1.000000e+00 : f32
    %54 = vector.broadcast %cst_21 : f32 to vector<8x128xf32>
    %55 = arith.addf %54, %53 : vector<8x128xf32>
    %56 = arith.divf %54, %55 : vector<8x128xf32>
    %57 = vector.extract_strided_slice %50 {offsets = [0, 128], sizes = [8, 128], strides = [1, 1]} : vector<8x512xf32> to vector<8x128xf32>
    %58 = arith.negf %57 : vector<8x128xf32>
    %59 = math.exp %58 : vector<8x128xf32>
    %cst_22 = arith.constant 1.000000e+00 : f32
    %60 = vector.broadcast %cst_22 : f32 to vector<8x128xf32>
    %61 = arith.addf %60, %59 : vector<8x128xf32>
    %62 = arith.divf %60, %61 : vector<8x128xf32>
    %63 = vector.extract_strided_slice %50 {offsets = [0, 256], sizes = [8, 128], strides = [1, 1]} : vector<8x512xf32> to vector<8x128xf32>
    %64 = math.tanh %63 : vector<8x128xf32>
    %65 = vector.extract_strided_slice %50 {offsets = [0, 384], sizes = [8, 128], strides = [1, 1]} : vector<8x512xf32> to vector<8x128xf32>
    %66 = arith.negf %65 : vector<8x128xf32>
    %67 = math.exp %66 : vector<8x128xf32>
    %cst_23 = arith.constant 1.000000e+00 : f32
    %68 = vector.broadcast %cst_23 : f32 to vector<8x128xf32>
    %69 = arith.addf %68, %67 : vector<8x128xf32>
    %70 = arith.divf %68, %69 : vector<8x128xf32>
    %71 = arith.mulf %62, %38 : vector<8x128xf32>
    %72 = arith.mulf %56, %64 : vector<8x128xf32>
    %73 = arith.addf %71, %72 : vector<8x128xf32>
    %74 = math.tanh %73 : vector<8x128xf32>
    %75 = arith.mulf %70, %74 : vector<8x128xf32>
    %76 = arith.addi %6, %c1_i32 : i32
    %77 = vector.broadcast %76 : i32 to vector<8x128xi32>
    %78 = arith.cmpi eq, %5, %77 : vector<8x128xi32>
    %79 = arith.select %78, %75, %44 : vector<8x128xi1>, vector<8x128xf32>
    %c2_i32 = arith.constant 2 : i32
    %80 = arith.index_cast %c2_i32 : i32 to index
    %c0_24 = arith.constant 0 : index
    %c0_25 = arith.constant 0 : index
    %81 = vector.load %arg2[%80, %c0_24, %c0_25] : memref<8x8x512xf32, #tpu.memory_space<vmem>>, vector<1x8x512xf32>
    %82 = vector.shape_cast %81 : vector<1x8x512xf32> to vector<8x512xf32>
    %c0_26 = arith.constant 0 : index
    %c0_27 = arith.constant 0 : index
    %83 = vector.load %arg4[%c0_26, %c0_27] : memref<128x512xf32, #tpu.memory_space<vmem>>, vector<128x512xf32>
    %cst_28 = arith.constant dense<0.000000e+00> : vector<8x512xf32>
    %84 = tpu.matmul %75, %83, %cst_28 {dimension_numbers = #tpu.dot_dimension_numbers<[1], [0], [0], [1], [0, 0, 1, 1], [], []>} : vector<8x128xf32>, vector<128x512xf32>, vector<8x512xf32> -> vector<8x512xf32>
    %85 = arith.addf %82, %84 : vector<8x512xf32>
    %86 = vector.extract_strided_slice %85 {offsets = [0, 0], sizes = [8, 128], strides = [1, 1]} : vector<8x512xf32> to vector<8x128xf32>
    %87 = arith.negf %86 : vector<8x128xf32>
    %88 = math.exp %87 : vector<8x128xf32>
    %cst_29 = arith.constant 1.000000e+00 : f32
    %89 = vector.broadcast %cst_29 : f32 to vector<8x128xf32>
    %90 = arith.addf %89, %88 : vector<8x128xf32>
    %91 = arith.divf %89, %90 : vector<8x128xf32>
    %92 = vector.extract_strided_slice %85 {offsets = [0, 128], sizes = [8, 128], strides = [1, 1]} : vector<8x512xf32> to vector<8x128xf32>
    %93 = arith.negf %92 : vector<8x128xf32>
    %94 = math.exp %93 : vector<8x128xf32>
    %cst_30 = arith.constant 1.000000e+00 : f32
    %95 = vector.broadcast %cst_30 : f32 to vector<8x128xf32>
    %96 = arith.addf %95, %94 : vector<8x128xf32>
    %97 = arith.divf %95, %96 : vector<8x128xf32>
    %98 = vector.extract_strided_slice %85 {offsets = [0, 256], sizes = [8, 128], strides = [1, 1]} : vector<8x512xf32> to vector<8x128xf32>
    %99 = math.tanh %98 : vector<8x128xf32>
    %100 = vector.extract_strided_slice %85 {offsets = [0, 384], sizes = [8, 128], strides = [1, 1]} : vector<8x512xf32> to vector<8x128xf32>
    %101 = arith.negf %100 : vector<8x128xf32>
    %102 = math.exp %101 : vector<8x128xf32>
    %cst_31 = arith.constant 1.000000e+00 : f32
    %103 = vector.broadcast %cst_31 : f32 to vector<8x128xf32>
    %104 = arith.addf %103, %102 : vector<8x128xf32>
    %105 = arith.divf %103, %104 : vector<8x128xf32>
    %106 = arith.mulf %97, %73 : vector<8x128xf32>
    %107 = arith.mulf %91, %99 : vector<8x128xf32>
    %108 = arith.addf %106, %107 : vector<8x128xf32>
    %109 = math.tanh %108 : vector<8x128xf32>
    %110 = arith.mulf %105, %109 : vector<8x128xf32>
    %111 = arith.addi %6, %c2_i32 : i32
    %112 = vector.broadcast %111 : i32 to vector<8x128xi32>
    %113 = arith.cmpi eq, %5, %112 : vector<8x128xi32>
    %114 = arith.select %113, %110, %79 : vector<8x128xi1>, vector<8x128xf32>
    %c3_i32 = arith.constant 3 : i32
    %115 = arith.index_cast %c3_i32 : i32 to index
    %c0_32 = arith.constant 0 : index
    %c0_33 = arith.constant 0 : index
    %116 = vector.load %arg2[%115, %c0_32, %c0_33] : memref<8x8x512xf32, #tpu.memory_space<vmem>>, vector<1x8x512xf32>
    %117 = vector.shape_cast %116 : vector<1x8x512xf32> to vector<8x512xf32>
    %c0_34 = arith.constant 0 : index
    %c0_35 = arith.constant 0 : index
    %118 = vector.load %arg4[%c0_34, %c0_35] : memref<128x512xf32, #tpu.memory_space<vmem>>, vector<128x512xf32>
    %cst_36 = arith.constant dense<0.000000e+00> : vector<8x512xf32>
    %119 = tpu.matmul %110, %118, %cst_36 {dimension_numbers = #tpu.dot_dimension_numbers<[1], [0], [0], [1], [0, 0, 1, 1], [], []>} : vector<8x128xf32>, vector<128x512xf32>, vector<8x512xf32> -> vector<8x512xf32>
    %120 = arith.addf %117, %119 : vector<8x512xf32>
    %121 = vector.extract_strided_slice %120 {offsets = [0, 0], sizes = [8, 128], strides = [1, 1]} : vector<8x512xf32> to vector<8x128xf32>
    %122 = arith.negf %121 : vector<8x128xf32>
    %123 = math.exp %122 : vector<8x128xf32>
    %cst_37 = arith.constant 1.000000e+00 : f32
    %124 = vector.broadcast %cst_37 : f32 to vector<8x128xf32>
    %125 = arith.addf %124, %123 : vector<8x128xf32>
    %126 = arith.divf %124, %125 : vector<8x128xf32>
    %127 = vector.extract_strided_slice %120 {offsets = [0, 128], sizes = [8, 128], strides = [1, 1]} : vector<8x512xf32> to vector<8x128xf32>
    %128 = arith.negf %127 : vector<8x128xf32>
    %129 = math.exp %128 : vector<8x128xf32>
    %cst_38 = arith.constant 1.000000e+00 : f32
    %130 = vector.broadcast %cst_38 : f32 to vector<8x128xf32>
    %131 = arith.addf %130, %129 : vector<8x128xf32>
    %132 = arith.divf %130, %131 : vector<8x128xf32>
    %133 = vector.extract_strided_slice %120 {offsets = [0, 256], sizes = [8, 128], strides = [1, 1]} : vector<8x512xf32> to vector<8x128xf32>
    %134 = math.tanh %133 : vector<8x128xf32>
    %135 = vector.extract_strided_slice %120 {offsets = [0, 384], sizes = [8, 128], strides = [1, 1]} : vector<8x512xf32> to vector<8x128xf32>
    %136 = arith.negf %135 : vector<8x128xf32>
    %137 = math.exp %136 : vector<8x128xf32>
    %cst_39 = arith.constant 1.000000e+00 : f32
    %138 = vector.broadcast %cst_39 : f32 to vector<8x128xf32>
    %139 = arith.addf %138, %137 : vector<8x128xf32>
    %140 = arith.divf %138, %139 : vector<8x128xf32>
    %141 = arith.mulf %132, %108 : vector<8x128xf32>
    %142 = arith.mulf %126, %134 : vector<8x128xf32>
    %143 = arith.addf %141, %142 : vector<8x128xf32>
    %144 = math.tanh %143 : vector<8x128xf32>
    %145 = arith.mulf %140, %144 : vector<8x128xf32>
    %146 = arith.addi %6, %c3_i32 : i32
    %147 = vector.broadcast %146 : i32 to vector<8x128xi32>
    %148 = arith.cmpi eq, %5, %147 : vector<8x128xi32>
    %149 = arith.select %148, %145, %114 : vector<8x128xi1>, vector<8x128xf32>
    %c4_i32 = arith.constant 4 : i32
    %150 = arith.index_cast %c4_i32 : i32 to index
    %c0_40 = arith.constant 0 : index
    %c0_41 = arith.constant 0 : index
    %151 = vector.load %arg2[%150, %c0_40, %c0_41] : memref<8x8x512xf32, #tpu.memory_space<vmem>>, vector<1x8x512xf32>
    %152 = vector.shape_cast %151 : vector<1x8x512xf32> to vector<8x512xf32>
    %c0_42 = arith.constant 0 : index
    %c0_43 = arith.constant 0 : index
    %153 = vector.load %arg4[%c0_42, %c0_43] : memref<128x512xf32, #tpu.memory_space<vmem>>, vector<128x512xf32>
    %cst_44 = arith.constant dense<0.000000e+00> : vector<8x512xf32>
    %154 = tpu.matmul %145, %153, %cst_44 {dimension_numbers = #tpu.dot_dimension_numbers<[1], [0], [0], [1], [0, 0, 1, 1], [], []>} : vector<8x128xf32>, vector<128x512xf32>, vector<8x512xf32> -> vector<8x512xf32>
    %155 = arith.addf %152, %154 : vector<8x512xf32>
    %156 = vector.extract_strided_slice %155 {offsets = [0, 0], sizes = [8, 128], strides = [1, 1]} : vector<8x512xf32> to vector<8x128xf32>
    %157 = arith.negf %156 : vector<8x128xf32>
    %158 = math.exp %157 : vector<8x128xf32>
    %cst_45 = arith.constant 1.000000e+00 : f32
    %159 = vector.broadcast %cst_45 : f32 to vector<8x128xf32>
    %160 = arith.addf %159, %158 : vector<8x128xf32>
    %161 = arith.divf %159, %160 : vector<8x128xf32>
    %162 = vector.extract_strided_slice %155 {offsets = [0, 128], sizes = [8, 128], strides = [1, 1]} : vector<8x512xf32> to vector<8x128xf32>
    %163 = arith.negf %162 : vector<8x128xf32>
    %164 = math.exp %163 : vector<8x128xf32>
    %cst_46 = arith.constant 1.000000e+00 : f32
    %165 = vector.broadcast %cst_46 : f32 to vector<8x128xf32>
    %166 = arith.addf %165, %164 : vector<8x128xf32>
    %167 = arith.divf %165, %166 : vector<8x128xf32>
    %168 = vector.extract_strided_slice %155 {offsets = [0, 256], sizes = [8, 128], strides = [1, 1]} : vector<8x512xf32> to vector<8x128xf32>
    %169 = math.tanh %168 : vector<8x128xf32>
    %170 = vector.extract_strided_slice %155 {offsets = [0, 384], sizes = [8, 128], strides = [1, 1]} : vector<8x512xf32> to vector<8x128xf32>
    %171 = arith.negf %170 : vector<8x128xf32>
    %172 = math.exp %171 : vector<8x128xf32>
    %cst_47 = arith.constant 1.000000e+00 : f32
    %173 = vector.broadcast %cst_47 : f32 to vector<8x128xf32>
    %174 = arith.addf %173, %172 : vector<8x128xf32>
    %175 = arith.divf %173, %174 : vector<8x128xf32>
    %176 = arith.mulf %167, %143 : vector<8x128xf32>
    %177 = arith.mulf %161, %169 : vector<8x128xf32>
    %178 = arith.addf %176, %177 : vector<8x128xf32>
    %179 = math.tanh %178 : vector<8x128xf32>
    %180 = arith.mulf %175, %179 : vector<8x128xf32>
    %181 = arith.addi %6, %c4_i32 : i32
    %182 = vector.broadcast %181 : i32 to vector<8x128xi32>
    %183 = arith.cmpi eq, %5, %182 : vector<8x128xi32>
    %184 = arith.select %183, %180, %149 : vector<8x128xi1>, vector<8x128xf32>
    %c5_i32 = arith.constant 5 : i32
    %185 = arith.index_cast %c5_i32 : i32 to index
    %c0_48 = arith.constant 0 : index
    %c0_49 = arith.constant 0 : index
    %186 = vector.load %arg2[%185, %c0_48, %c0_49] : memref<8x8x512xf32, #tpu.memory_space<vmem>>, vector<1x8x512xf32>
    %187 = vector.shape_cast %186 : vector<1x8x512xf32> to vector<8x512xf32>
    %c0_50 = arith.constant 0 : index
    %c0_51 = arith.constant 0 : index
    %188 = vector.load %arg4[%c0_50, %c0_51] : memref<128x512xf32, #tpu.memory_space<vmem>>, vector<128x512xf32>
    %cst_52 = arith.constant dense<0.000000e+00> : vector<8x512xf32>
    %189 = tpu.matmul %180, %188, %cst_52 {dimension_numbers = #tpu.dot_dimension_numbers<[1], [0], [0], [1], [0, 0, 1, 1], [], []>} : vector<8x128xf32>, vector<128x512xf32>, vector<8x512xf32> -> vector<8x512xf32>
    %190 = arith.addf %187, %189 : vector<8x512xf32>
    %191 = vector.extract_strided_slice %190 {offsets = [0, 0], sizes = [8, 128], strides = [1, 1]} : vector<8x512xf32> to vector<8x128xf32>
    %192 = arith.negf %191 : vector<8x128xf32>
    %193 = math.exp %192 : vector<8x128xf32>
    %cst_53 = arith.constant 1.000000e+00 : f32
    %194 = vector.broadcast %cst_53 : f32 to vector<8x128xf32>
    %195 = arith.addf %194, %193 : vector<8x128xf32>
    %196 = arith.divf %194, %195 : vector<8x128xf32>
    %197 = vector.extract_strided_slice %190 {offsets = [0, 128], sizes = [8, 128], strides = [1, 1]} : vector<8x512xf32> to vector<8x128xf32>
    %198 = arith.negf %197 : vector<8x128xf32>
    %199 = math.exp %198 : vector<8x128xf32>
    %cst_54 = arith.constant 1.000000e+00 : f32
    %200 = vector.broadcast %cst_54 : f32 to vector<8x128xf32>
    %201 = arith.addf %200, %199 : vector<8x128xf32>
    %202 = arith.divf %200, %201 : vector<8x128xf32>
    %203 = vector.extract_strided_slice %190 {offsets = [0, 256], sizes = [8, 128], strides = [1, 1]} : vector<8x512xf32> to vector<8x128xf32>
    %204 = math.tanh %203 : vector<8x128xf32>
    %205 = vector.extract_strided_slice %190 {offsets = [0, 384], sizes = [8, 128], strides = [1, 1]} : vector<8x512xf32> to vector<8x128xf32>
    %206 = arith.negf %205 : vector<8x128xf32>
    %207 = math.exp %206 : vector<8x128xf32>
    %cst_55 = arith.constant 1.000000e+00 : f32
    %208 = vector.broadcast %cst_55 : f32 to vector<8x128xf32>
    %209 = arith.addf %208, %207 : vector<8x128xf32>
    %210 = arith.divf %208, %209 : vector<8x128xf32>
    %211 = arith.mulf %202, %178 : vector<8x128xf32>
    %212 = arith.mulf %196, %204 : vector<8x128xf32>
    %213 = arith.addf %211, %212 : vector<8x128xf32>
    %214 = math.tanh %213 : vector<8x128xf32>
    %215 = arith.mulf %210, %214 : vector<8x128xf32>
    %216 = arith.addi %6, %c5_i32 : i32
    %217 = vector.broadcast %216 : i32 to vector<8x128xi32>
    %218 = arith.cmpi eq, %5, %217 : vector<8x128xi32>
    %219 = arith.select %218, %215, %184 : vector<8x128xi1>, vector<8x128xf32>
    %c6_i32 = arith.constant 6 : i32
    %220 = arith.index_cast %c6_i32 : i32 to index
    %c0_56 = arith.constant 0 : index
    %c0_57 = arith.constant 0 : index
    %221 = vector.load %arg2[%220, %c0_56, %c0_57] : memref<8x8x512xf32, #tpu.memory_space<vmem>>, vector<1x8x512xf32>
    %222 = vector.shape_cast %221 : vector<1x8x512xf32> to vector<8x512xf32>
    %c0_58 = arith.constant 0 : index
    %c0_59 = arith.constant 0 : index
    %223 = vector.load %arg4[%c0_58, %c0_59] : memref<128x512xf32, #tpu.memory_space<vmem>>, vector<128x512xf32>
    %cst_60 = arith.constant dense<0.000000e+00> : vector<8x512xf32>
    %224 = tpu.matmul %215, %223, %cst_60 {dimension_numbers = #tpu.dot_dimension_numbers<[1], [0], [0], [1], [0, 0, 1, 1], [], []>} : vector<8x128xf32>, vector<128x512xf32>, vector<8x512xf32> -> vector<8x512xf32>
    %225 = arith.addf %222, %224 : vector<8x512xf32>
    %226 = vector.extract_strided_slice %225 {offsets = [0, 0], sizes = [8, 128], strides = [1, 1]} : vector<8x512xf32> to vector<8x128xf32>
    %227 = arith.negf %226 : vector<8x128xf32>
    %228 = math.exp %227 : vector<8x128xf32>
    %cst_61 = arith.constant 1.000000e+00 : f32
    %229 = vector.broadcast %cst_61 : f32 to vector<8x128xf32>
    %230 = arith.addf %229, %228 : vector<8x128xf32>
    %231 = arith.divf %229, %230 : vector<8x128xf32>
    %232 = vector.extract_strided_slice %225 {offsets = [0, 128], sizes = [8, 128], strides = [1, 1]} : vector<8x512xf32> to vector<8x128xf32>
    %233 = arith.negf %232 : vector<8x128xf32>
    %234 = math.exp %233 : vector<8x128xf32>
    %cst_62 = arith.constant 1.000000e+00 : f32
    %235 = vector.broadcast %cst_62 : f32 to vector<8x128xf32>
    %236 = arith.addf %235, %234 : vector<8x128xf32>
    %237 = arith.divf %235, %236 : vector<8x128xf32>
    %238 = vector.extract_strided_slice %225 {offsets = [0, 256], sizes = [8, 128], strides = [1, 1]} : vector<8x512xf32> to vector<8x128xf32>
    %239 = math.tanh %238 : vector<8x128xf32>
    %240 = vector.extract_strided_slice %225 {offsets = [0, 384], sizes = [8, 128], strides = [1, 1]} : vector<8x512xf32> to vector<8x128xf32>
    %241 = arith.negf %240 : vector<8x128xf32>
    %242 = math.exp %241 : vector<8x128xf32>
    %cst_63 = arith.constant 1.000000e+00 : f32
    %243 = vector.broadcast %cst_63 : f32 to vector<8x128xf32>
    %244 = arith.addf %243, %242 : vector<8x128xf32>
    %245 = arith.divf %243, %244 : vector<8x128xf32>
    %246 = arith.mulf %237, %213 : vector<8x128xf32>
    %247 = arith.mulf %231, %239 : vector<8x128xf32>
    %248 = arith.addf %246, %247 : vector<8x128xf32>
    %249 = math.tanh %248 : vector<8x128xf32>
    %250 = arith.mulf %245, %249 : vector<8x128xf32>
    %251 = arith.addi %6, %c6_i32 : i32
    %252 = vector.broadcast %251 : i32 to vector<8x128xi32>
    %253 = arith.cmpi eq, %5, %252 : vector<8x128xi32>
    %254 = arith.select %253, %250, %219 : vector<8x128xi1>, vector<8x128xf32>
    %c7_i32 = arith.constant 7 : i32
    %255 = arith.index_cast %c7_i32 : i32 to index
    %c0_64 = arith.constant 0 : index
    %c0_65 = arith.constant 0 : index
    %256 = vector.load %arg2[%255, %c0_64, %c0_65] : memref<8x8x512xf32, #tpu.memory_space<vmem>>, vector<1x8x512xf32>
    %257 = vector.shape_cast %256 : vector<1x8x512xf32> to vector<8x512xf32>
    %c0_66 = arith.constant 0 : index
    %c0_67 = arith.constant 0 : index
    %258 = vector.load %arg4[%c0_66, %c0_67] : memref<128x512xf32, #tpu.memory_space<vmem>>, vector<128x512xf32>
    %cst_68 = arith.constant dense<0.000000e+00> : vector<8x512xf32>
    %259 = tpu.matmul %250, %258, %cst_68 {dimension_numbers = #tpu.dot_dimension_numbers<[1], [0], [0], [1], [0, 0, 1, 1], [], []>} : vector<8x128xf32>, vector<128x512xf32>, vector<8x512xf32> -> vector<8x512xf32>
    %260 = arith.addf %257, %259 : vector<8x512xf32>
    %261 = vector.extract_strided_slice %260 {offsets = [0, 0], sizes = [8, 128], strides = [1, 1]} : vector<8x512xf32> to vector<8x128xf32>
    %262 = arith.negf %261 : vector<8x128xf32>
    %263 = math.exp %262 : vector<8x128xf32>
    %cst_69 = arith.constant 1.000000e+00 : f32
    %264 = vector.broadcast %cst_69 : f32 to vector<8x128xf32>
    %265 = arith.addf %264, %263 : vector<8x128xf32>
    %266 = arith.divf %264, %265 : vector<8x128xf32>
    %267 = vector.extract_strided_slice %260 {offsets = [0, 128], sizes = [8, 128], strides = [1, 1]} : vector<8x512xf32> to vector<8x128xf32>
    %268 = arith.negf %267 : vector<8x128xf32>
    %269 = math.exp %268 : vector<8x128xf32>
    %cst_70 = arith.constant 1.000000e+00 : f32
    %270 = vector.broadcast %cst_70 : f32 to vector<8x128xf32>
    %271 = arith.addf %270, %269 : vector<8x128xf32>
    %272 = arith.divf %270, %271 : vector<8x128xf32>
    %273 = vector.extract_strided_slice %260 {offsets = [0, 256], sizes = [8, 128], strides = [1, 1]} : vector<8x512xf32> to vector<8x128xf32>
    %274 = math.tanh %273 : vector<8x128xf32>
    %275 = vector.extract_strided_slice %260 {offsets = [0, 384], sizes = [8, 128], strides = [1, 1]} : vector<8x512xf32> to vector<8x128xf32>
    %276 = arith.negf %275 : vector<8x128xf32>
    %277 = math.exp %276 : vector<8x128xf32>
    %cst_71 = arith.constant 1.000000e+00 : f32
    %278 = vector.broadcast %cst_71 : f32 to vector<8x128xf32>
    %279 = arith.addf %278, %277 : vector<8x128xf32>
    %280 = arith.divf %278, %279 : vector<8x128xf32>
    %281 = arith.mulf %272, %248 : vector<8x128xf32>
    %282 = arith.mulf %266, %274 : vector<8x128xf32>
    %283 = arith.addf %281, %282 : vector<8x128xf32>
    %284 = math.tanh %283 : vector<8x128xf32>
    %285 = arith.mulf %280, %284 : vector<8x128xf32>
    %286 = arith.addi %6, %c7_i32 : i32
    %287 = vector.broadcast %286 : i32 to vector<8x128xi32>
    %288 = arith.cmpi eq, %5, %287 : vector<8x128xi32>
    %289 = arith.select %288, %285, %254 : vector<8x128xi1>, vector<8x128xf32>
    %c8_i32_72 = arith.constant 8 : i32
    %c0_73 = arith.constant 0 : index
    %c0_74 = arith.constant 0 : index
    %290 = vector.load %arg8[%c0_73, %c0_74] : memref<8x128xf32, #tpu.memory_space<vmem>>, vector<8x128xf32>
    tpu.vector_store %arg8[%c0_73, %c0_74], %285 {strides = array<i32>} : memref<8x128xf32, #tpu.memory_space<vmem>>, vector<8x128xf32>,
    %c0_75 = arith.constant 0 : index
    %c0_76 = arith.constant 0 : index
    %291 = vector.load %arg9[%c0_75, %c0_76] : memref<8x128xf32, #tpu.memory_space<vmem>>, vector<8x128xf32>
    tpu.vector_store %arg9[%c0_75, %c0_76], %283 {strides = array<i32>} : memref<8x128xf32, #tpu.memory_space<vmem>>, vector<8x128xf32>,
    %c0_77 = arith.constant 0 : index
    %c0_78 = arith.constant 0 : index
    %292 = vector.load %arg7[%c0_77, %c0_78] : memref<8x128xf32, #tpu.memory_space<vmem>>, vector<8x128xf32>
    tpu.vector_store %arg7[%c0_77, %c0_78], %289 {strides = array<i32>} : memref<8x128xf32, #tpu.memory_space<vmem>>, vector<8x128xf32>,
    return
  }
  func.func @transform_0(%arg0: i32, %arg1: i32) -> (i32, i32, i32) {
    %c0_i32 = arith.constant 0 : i32
    %c0_i32_0 = arith.constant 0 : i32
    return %arg1, %arg0, %c0_i32 : i32, i32, i32
  }
  func.func @transform_1(%arg0: i32, %arg1: i32) -> (i32, i32) {
    %c0_i32 = arith.constant 0 : i32
    %c0_i32_0 = arith.constant 0 : i32
    return %arg0, %c0_i32 : i32, i32
  }
  func.func @transform_2(%arg0: i32, %arg1: i32) -> (i32, i32) {
    %c0_i32 = arith.constant 0 : i32
    %c0_i32_0 = arith.constant 0 : i32
    %c0_i32_1 = arith.constant 0 : i32
    return %c0_i32, %c0_i32_0 : i32, i32
  }
  func.func @transform_3(%arg0: i32, %arg1: i32) -> (i32, i32) {
    %c0_i32 = arith.constant 0 : i32
    %c0_i32_0 = arith.constant 0 : i32
    return %arg0, %c0_i32 : i32, i32
  }
  func.func @transform_4(%arg0: i32, %arg1: i32) -> (i32, i32) {
    %c0_i32 = arith.constant 0 : i32
    %c0_i32_0 = arith.constant 0 : i32
    return %arg0, %c0_i32 : i32, i32
  }
  func.func @transform_5(%arg0: i32, %arg1: i32) -> (i32, i32) {
    %c0_i32 = arith.constant 0 : i32
    %c0_i32_0 = arith.constant 0 : i32
    return %arg0, %c0_i32 : i32, i32
  }
}

</mosaic_0001>

<llo_original>
// kernel: tpu_custom_call.1
$region0: #{tpu_custom_call.1}
  #allocation0 [shape = 'u32[]', space=smem, size = 0x4, offset = 0x4, fixed_abs, tag = 'smem constant byte address 0x4 - core index']
  #allocation1 [shape = 'u32[144,128]{1,0:T(1,128)}', space=vmem, size = 0x12000, scoped, tag = 'internal scratch']
  #allocation2 [shape = 'f32[8,128]{1,0:T(8,128)}', space=vmem, size = 0x1000, scoped, tag = 'scratch operand']
  #allocation3 [shape = 'f32[8,128]{1,0:T(8,128)}', space=vmem, size = 0x1000, scoped, tag = 'scratch operand']
  %s0 = inlined_call_operand.hbm [shape: f32[8,8,512], index: 0, kind: input, shape index: {}]
  %s1 = inlined_call_operand.vmem [shape: s32[8,1], index: 1, kind: input, shape index: {}]
  %s2 = inlined_call_operand.hbm [shape: f32[128,512], index: 2, kind: input, shape index: {}]
  %s3 = inlined_call_operand.vmem [shape: f32[8,128], index: 3, kind: input, shape index: {}]
  %s4 = inlined_call_operand.vmem [shape: f32[8,128], index: 4, kind: input, shape index: {}]
  %s5 = inlined_call_operand.hbm [shape: f32[8,128], index: 5, kind: output, shape index: {}]
  %s6 = sld [smem:[#allocation0]]
  $region42: #{tpu_custom_call.1} parent=0
    _
  %s8 = ssub.s32 1, %s6
  %s9 = scalar_select 0, %s8, %s6
  $region1: #{tpu_custom_call.1} parent=0
    #allocation4 [shape = 'u8[131072]{0}', space=vmem, size = 0x20000, scoped, tag = 'input window, operand 0, single buffered']
    #allocation5 [shape = 's32[1]{0}', space=sflag, size = 0x4, scoped, tag = 'scoped memory for tpu_custom_call.1']
    #allocation6 [shape = 's32[1]{0}', space=sflag, size = 0x4, scoped, tag = 'scoped memory for tpu_custom_call.1']
    #allocation7 [shape = 'u8[262144]{0}', space=vmem, size = 0x40000, scoped, tag = 'input window, operand 2, single buffered']
    #allocation8 [shape = 's32[1]{0}', space=sflag, size = 0x4, scoped, tag = 'scoped memory for tpu_custom_call.1']
    #allocation9 [shape = 'u8[4096]{0}', space=vmem, size = 0x1000, scoped, tag = 'output window, operand 0, single buffered']
    %10 = vsyncpa [#allocation5], 0
    %11 = vsyncpa [#allocation8], 0
    %12 = vsyncpa [#allocation6], 0
    // Predicated region
    $region2: #{tpu_custom_call.1} parent=1 // pred_check
      _
    $region3: #{tpu_custom_call.1} parent=1 // pred_check_branch
      %14 = sbr.rel (0) target = $region5
    $region4: #{tpu_custom_call.1} parent=1 // pred_region
      %s16 = ssub.s32 4096, 4096
      %17 = vsyncadd [#allocation5], %s16
      %s18 = sshll.u32 [#allocation4], 4
      %s19 = int_to_ptr.vmem [resolvable:$true] %s18
      %24 = dma.hbm_to_vmem [thread:$0]  %s0, 4096, %s19, [#allocation5], 512, 512, 32
    $region5: #{tpu_custom_call.1} parent=1 // pred_fallthru
      _
    // Predicated region
    $region6: #{tpu_custom_call.1} parent=1 // pred_check
      _
    $region7: #{tpu_custom_call.1} parent=1 // pred_check_branch
      %26 = sbr.rel (0) target = $region9
    $region8: #{tpu_custom_call.1} parent=1 // pred_region
      _
    $region9: #{tpu_custom_call.1} parent=1 // pred_fallthru
      _
    // Predicated region
    $region10: #{tpu_custom_call.1} parent=1 // pred_check
      _
    $region11: #{tpu_custom_call.1} parent=1 // pred_check_branch
      %28 = sbr.rel (0) target = $region13
    $region12: #{tpu_custom_call.1} parent=1 // pred_region
      %s30 = ssub.s32 8192, 8192
      %31 = vsyncadd [#allocation8], %s30
      %s32 = sshll.u32 [#allocation7], 4
      %s33 = int_to_ptr.vmem [resolvable:$true] %s32
      %38 = dma.hbm_to_vmem [thread:$0]  %s2, 8192, %s33, [#allocation8], 512, 512, 32
    $region13: #{tpu_custom_call.1} parent=1 // pred_fallthru
      _
    // Predicated region
    $region14: #{tpu_custom_call.1} parent=1 // pred_check
      _
    $region15: #{tpu_custom_call.1} parent=1 // pred_check_branch
      %40 = sbr.rel (0) target = $region17
    $region16: #{tpu_custom_call.1} parent=1 // pred_region
      _
    $region17: #{tpu_custom_call.1} parent=1 // pred_fallthru
      _
    // Predicated region
    $region18: #{tpu_custom_call.1} parent=1 // pred_check
      _
    $region19: #{tpu_custom_call.1} parent=1 // pred_check_branch
      %42 = sbr.rel (0) target = $region21
    $region20: #{tpu_custom_call.1} parent=1 // pred_region
      _
    $region21: #{tpu_custom_call.1} parent=1 // pred_fallthru
      _
    // Predicated region
    $region22: #{tpu_custom_call.1} parent=1 // pred_check
      _
    $region23: #{tpu_custom_call.1} parent=1 // pred_check_branch
      %44 = sbr.rel (0) target = $region25
    $region24: #{tpu_custom_call.1} parent=1 // pred_region
      %45 = dma.done [#allocation5], 4096
    $region25: #{tpu_custom_call.1} parent=1 // pred_fallthru
      _
    // Predicated region
    $region26: #{tpu_custom_call.1} parent=1 // pred_check
      _
    $region27: #{tpu_custom_call.1} parent=1 // pred_check_branch
      %47 = sbr.rel (0) target = $region29
    $region28: #{tpu_custom_call.1} parent=1 // pred_region
      %48 = dma.done [#allocation8], 8192
    $region29: #{tpu_custom_call.1} parent=1 // pred_fallthru
      _
    %p49 = scmp.eq.s32.totalorder 0, 0
    // Predicated region
    $region30: #{tpu_custom_call.1} parent=1 // pred_check
      %p50 = pneg %p49
    $region31: #{tpu_custom_call.1} parent=1 // pred_check_branch
      %52 = sbr.rel (%p50) target = $region33
    $region32: #{tpu_custom_call.1} parent=1 // pred_region
      %v53 = vld [vmem:[%s3] sm:$0xff]
      %54 = vst [vmem:[#allocation2] sm:$0xff] %v53
      %v55 = vld [vmem:[%s4] sm:$0xff]
      %56 = vst [vmem:[#allocation3] sm:$0xff] %v55
      %57 = vst [vmem:[#allocation9] sm:$0xff] 0.0
    $region33: #{tpu_custom_call.1} parent=1 // pred_fallthru
      _
    %v58 = vld [vmem:[%s1] sm:$0xff]
    %59 = vset.pattern.permute.xlu0 0
    %60 = vperm.xlu0 %59, %v58
    %v61 = vpop.permute.xlu0 %60
    %s62 = smul.u32 0, 8
    %v63 = vld [vmem:[#allocation2] sm:$0xff]
    %v64 = vld [vmem:[#allocation3] sm:$0xff]
    %v65 = vld [vmem:[#allocation9] sm:$0xff]
    %v66 = vld [vmem:[#allocation4] sm:$0xff]
    %v67 = vld [vmem:[#allocation4 + $0x8] sm:$0xff]
    %v68 = vld [vmem:[#allocation4 + $0x10] sm:$0xff]
    %v69 = vld [vmem:[#allocation4 + $0x18] sm:$0xff]
    %v70 = vld [vmem:[#allocation7] sm:$0xff]
    %v71 = vld [vmem:[#allocation7 + $0x8] sm:$0xff]
    %v72 = vld [vmem:[#allocation7 + $0x10] sm:$0xff]
    %v73 = vld [vmem:[#allocation7 + $0x18] sm:$0xff]
    %v74 = vld [vmem:[#allocation7 + $0x20] sm:$0xff]
    %v75 = vld [vmem:[#allocation7 + $0x28] sm:$0xff]
    %v76 = vld [vmem:[#allocation7 + $0x30] sm:$0xff]
    %v77 = vld [vmem:[#allocation7 + $0x38] sm:$0xff]
    %v78 = vld [vmem:[#allocation7 + $0x40] sm:$0xff]
    %v79 = vld [vmem:[#allocation7 + $0x48] sm:$0xff]
    %v80 = vld [vmem:[#allocation7 + $0x50] sm:$0xff]
    %v81 = vld [vmem:[#allocation7 + $0x58] sm:$0xff]
    %v82 = vld [vmem:[#allocation7 + $0x60] sm:$0xff]
    %v83 = vld [vmem:[#allocation7 + $0x68] sm:$0xff]
    %v84 = vld [vmem:[#allocation7 + $0x70] sm:$0xff]
    %v85 = vld [vmem:[#allocation7 + $0x78] sm:$0xff]
    %v86 = vld [vmem:[#allocation7 + $0x80] sm:$0xff]
    %v87 = vld [vmem:[#allocation7 + $0x88] sm:$0xff]
    %v88 = vld [vmem:[#allocation7 + $0x90] sm:$0xff]
    %v89 = vld [vmem:[#allocation7 + $0x98] sm:$0xff]
    %v90 = vld [vmem:[#allocation7 + $0xa0] sm:$0xff]
    %v91 = vld [vmem:[#allocation7 + $0xa8] sm:$0xff]
    %v92 = vld [vmem:[#allocation7 + $0xb0] sm:$0xff]
    %v93 = vld [vmem:[#allocation7 + $0xb8] sm:$0xff]
    %v94 = vld [vmem:[#allocation7 + $0xc0] sm:$0xff]
    %v95 = vld [vmem:[#allocation7 + $0xc8] sm:$0xff]
    %v96 = vld [vmem:[#allocation7 + $0xd0] sm:$0xff]
    %v97 = vld [vmem:[#allocation7 + $0xd8] sm:$0xff]
    %v98 = vld [vmem:[#allocation7 + $0xe0] sm:$0xff]
    %v99 = vld [vmem:[#allocation7 + $0xe8] sm:$0xff]
    %v100 = vld [vmem:[#allocation7 + $0xf0] sm:$0xff]
    %v101 = vld [vmem:[#allocation7 + $0xf8] sm:$0xff]
    %v102 = vld [vmem:[#allocation7 + $0x100] sm:$0xff]
    %v103 = vld [vmem:[#allocation7 + $0x108] sm:$0xff]
    %v104 = vld [vmem:[#allocation7 + $0x110] sm:$0xff]
    %v105 = vld [vmem:[#allocation7 + $0x118] sm:$0xff]
    %v106 = vld [vmem:[#allocation7 + $0x120] sm:$0xff]
    %v107 = vld [vmem:[#allocation7 + $0x128] sm:$0xff]
    %v108 = vld [vmem:[#allocation7 + $0x130] sm:$0xff]
    %v109 = vld [vmem:[#allocation7 + $0x138] sm:$0xff]
    %v110 = vld [vmem:[#allocation7 + $0x140] sm:$0xff]
    %v111 = vld [vmem:[#allocation7 + $0x148] sm:$0xff]
    %v112 = vld [vmem:[#allocation7 + $0x150] sm:$0xff]
    %v113 = vld [vmem:[#allocation7 + $0x158] sm:$0xff]
    %v114 = vld [vmem:[#allocation7 + $0x160] sm:$0xff]
    %v115 = vld [vmem:[#allocation7 + $0x168] sm:$0xff]
    %v116 = vld [vmem:[#allocation7 + $0x170] sm:$0xff]
    %v117 = vld [vmem:[#allocation7 + $0x178] sm:$0xff]
    %v118 = vld [vmem:[#allocation7 + $0x180] sm:$0xff]
    %v119 = vld [vmem:[#allocation7 + $0x188] sm:$0xff]
    %v120 = vld [vmem:[#allocation7 + $0x190] sm:$0xff]
    %v121 = vld [vmem:[#allocation7 + $0x198] sm:$0xff]
    %v122 = vld [vmem:[#allocation7 + $0x1a0] sm:$0xff]
    %v123 = vld [vmem:[#allocation7 + $0x1a8] sm:$0xff]
    %v124 = vld [vmem:[#allocation7 + $0x1b0] sm:$0xff]
    %v125 = vld [vmem:[#allocation7 + $0x1b8] sm:$0xff]
    %v126 = vld [vmem:[#allocation7 + $0x1c0] sm:$0xff]
    %v127 = vld [vmem:[#allocation7 + $0x1c8] sm:$0xff]
    %v128 = vld [vmem:[#allocation7 + $0x1d0] sm:$0xff]
    %v129 = vld [vmem:[#allocation7 + $0x1d8] sm:$0xff]
    %v130 = vld [vmem:[#allocation7 + $0x1e0] sm:$0xff]
    %v131 = vld [vmem:[#allocation7 + $0x1e8] sm:$0xff]
    %v132 = vld [vmem:[#allocation7 + $0x1f0] sm:$0xff]
    %v133 = vld [vmem:[#allocation7 + $0x1f8] sm:$0xff]
    %134 = vmatprep.subr.mxu0 %v71
    %135 = vmatpush1.msra.mxu0 %v70
    %136 = vmatprep.subr.mxu0 %v75
    %137 = vmatpush1.msra.mxu0 %v74
    %138 = vmatprep.subr.mxu0 %v79
    %139 = vmatpush1.msra.mxu0 %v78
    %140 = vmatprep.subr.mxu0 %v83
    %141 = vmatpush1.msra.mxu0 %v82
    %142 = vmatprep.subr.mxu0 %v87
    %143 = vmatpush1.msra.mxu0 %v86
    %144 = vmatprep.subr.mxu0 %v91
    %145 = vmatpush1.msra.mxu0 %v90
    %146 = vmatprep.subr.mxu0 %v95
    %147 = vmatpush1.msra.mxu0 %v94
    %148 = vmatprep.subr.mxu0 %v99
    %149 = vmatpush1.msra.mxu0 %v98
    %150 = vmatprep.subr.mxu0 %v103
    %151 = vmatpush1.msra.mxu0 %v102
    %152 = vmatprep.subr.mxu0 %v107
    %153 = vmatpush1.msra.mxu0 %v106
    %154 = vmatprep.subr.mxu0 %v111
    %155 = vmatpush1.msra.mxu0 %v110
    %156 = vmatprep.subr.mxu0 %v115
    %157 = vmatpush1.msra.mxu0 %v114
    %158 = vmatprep.subr.mxu0 %v119
    %159 = vmatpush1.msra.mxu0 %v118
    %160 = vmatprep.subr.mxu0 %v123
    %161 = vmatpush1.msra.mxu0 %v122
    %162 = vmatprep.subr.mxu0 %v127
    %163 = vmatpush1.msra.mxu0 %v126
    %164 = vmatprep.subr.mxu0 %v131
    %165 = vmatpush1.msra.mxu0 %v130
    %166 = vmatprep.subr.mxu0 0.0
    %167 = vmatpush1.msra.mxu0 0.0
    %168 = vmatprep.subr.mxu0 0.0
    %169 = vmatpush1.msra.mxu0 0.0
    %170 = vmatprep.subr.mxu0 0.0
    %171 = vmatpush1.msra.mxu0 0.0
    %172 = vmatprep.subr.mxu0 0.0
    %173 = vmatpush1.msra.mxu0 0.0
    %174 = vmatprep.subr.mxu0 0.0
    %175 = vmatpush1.msra.mxu0 0.0
    %176 = vmatprep.subr.mxu0 0.0
    %177 = vmatpush1.msra.mxu0 0.0
    %178 = vmatprep.subr.mxu0 0.0
    %179 = vmatpush1.msra.mxu0 0.0
    %180 = vmatprep.subr.mxu0 0.0
    %181 = vmatpush1.msra.mxu0 0.0
    %182 = vmatprep.subr.mxu0 0.0
    %183 = vmatpush1.msra.mxu0 0.0
    %184 = vmatprep.subr.mxu0 0.0
    %185 = vmatpush1.msra.mxu0 0.0
    %186 = vmatprep.subr.mxu0 0.0
    %187 = vmatpush1.msra.mxu0 0.0
    %188 = vmatprep.subr.mxu0 0.0
    %189 = vmatpush1.msra.mxu0 0.0
    %190 = vmatprep.subr.mxu0 0.0
    %191 = vmatpush1.msra.mxu0 0.0
    %192 = vmatprep.subr.mxu0 0.0
    %193 = vmatpush1.msra.mxu0 0.0
    %194 = vmatprep.subr.mxu0 0.0
    %195 = vmatpush1.msra.mxu0 0.0
    %196 = vmatprep.subr.mxu0 0.0
    %197 = vmatpush1.msra.mxu0 0.0
    %198 = vmatprep.mubr.f32.mxu0 0.0
    %199 = vmatmul.mubr.f32.gmra.mrb[0].mxu0 %v63
    %v200 = vpop.f32.mrb[0].mxu0
    %v201 = vadd.f32 0.0, %v200
    %v202 = vpop.f32.mrb[0].mxu0
    %v203 = vadd.f32 0.0, %v202
    %204 = vdwg.mxu0
    %205 = vmatprep.subr.mxu0 %v73
    %206 = vmatpush1.msra.mxu0 %v72
    %207 = vmatprep.subr.mxu0 %v77
    %208 = vmatpush1.msra.mxu0 %v76
    %209 = vmatprep.subr.mxu0 %v81
    %210 = vmatpush1.msra.mxu0 %v80
    %211 = vmatprep.subr.mxu0 %v85
    %212 = vmatpush1.msra.mxu0 %v84
    %213 = vmatprep.subr.mxu0 %v89
    %214 = vmatpush1.msra.mxu0 %v88
    %215 = vmatprep.subr.mxu0 %v93
    %216 = vmatpush1.msra.mxu0 %v92
    %217 = vmatprep.subr.mxu0 %v97
    %218 = vmatpush1.msra.mxu0 %v96
    %219 = vmatprep.subr.mxu0 %v101
    %220 = vmatpush1.msra.mxu0 %v100
    %221 = vmatprep.subr.mxu0 %v105
    %222 = vmatpush1.msra.mxu0 %v104
    %223 = vmatprep.subr.mxu0 %v109
    %224 = vmatpush1.msra.mxu0 %v108
    %225 = vmatprep.subr.mxu0 %v113
    %226 = vmatpush1.msra.mxu0 %v112
    %227 = vmatprep.subr.mxu0 %v117
    %228 = vmatpush1.msra.mxu0 %v116
    %229 = vmatprep.subr.mxu0 %v121
    %230 = vmatpush1.msra.mxu0 %v120
    %231 = vmatprep.subr.mxu0 %v125
    %232 = vmatpush1.msra.mxu0 %v124
    %233 = vmatprep.subr.mxu0 %v129
    %234 = vmatpush1.msra.mxu0 %v128
    %235 = vmatprep.subr.mxu0 %v133
    %236 = vmatpush1.msra.mxu0 %v132
    %237 = vmatprep.subr.mxu0 0.0
    %238 = vmatpush1.msra.mxu0 0.0
    %239 = vmatprep.subr.mxu0 0.0
    %240 = vmatpush1.msra.mxu0 0.0
    %241 = vmatprep.subr.mxu0 0.0
    %242 = vmatpush1.msra.mxu0 0.0
    %243 = vmatprep.subr.mxu0 0.0
    %244 = vmatpush1.msra.mxu0 0.0
    %245 = vmatprep.subr.mxu0 0.0
    %246 = vmatpush1.msra.mxu0 0.0
    %247 = vmatprep.subr.mxu0 0.0
    %248 = vmatpush1.msra.mxu0 0.0
    %249 = vmatprep.subr.mxu0 0.0
    %250 = vmatpush1.msra.mxu0 0.0
    %251 = vmatprep.subr.mxu0 0.0
    %252 = vmatpush1.msra.mxu0 0.0
    %253 = vmatprep.subr.mxu0 0.0
    %254 = vmatpush1.msra.mxu0 0.0
    %255 = vmatprep.subr.mxu0 0.0
    %256 = vmatpush1.msra.mxu0 0.0
    %257 = vmatprep.subr.mxu0 0.0
    %258 = vmatpush1.msra.mxu0 0.0
    %259 = vmatprep.subr.mxu0 0.0
    %260 = vmatpush1.msra.mxu0 0.0
    %261 = vmatprep.subr.mxu0 0.0
    %262 = vmatpush1.msra.mxu0 0.0
    %263 = vmatprep.subr.mxu0 0.0
    %264 = vmatpush1.msra.mxu0 0.0
    %265 = vmatprep.subr.mxu0 0.0
    %266 = vmatpush1.msra.mxu0 0.0
    %267 = vmatprep.subr.mxu0 0.0
    %268 = vmatpush1.msra.mxu0 0.0
    %269 = vmatprep.mubr.f32.mxu0 0.0
    %270 = vmatmul.mubr.f32.gmra.mrb[0].mxu0 %v63
    %v271 = vpop.f32.mrb[0].mxu0
    %v272 = vadd.f32 0.0, %v271
    %v273 = vpop.f32.mrb[0].mxu0
    %v274 = vadd.f32 0.0, %v273
    %275 = vdwg.mxu0
    %v276 = vadd.f32 %v66, %v201
    %v277 = vadd.f32 %v67, %v203
    %v278 = vadd.f32 %v68, %v272
    %v279 = vadd.f32 %v69, %v274
    %v280 = vxor.u32 %v276, 2147483648
    %v281 = vmul.f32 %v280, 1.442695
    %v282 = vpow.pop %v281
    %v283 = vadd.f32 %v282, 1.0
    %v284 = vrcp.pop %v283
    %v285 = vmul.f32 1.0, %v284
    %v286 = vxor.u32 %v277, 2147483648
    %v287 = vmul.f32 %v286, 1.442695
    %v288 = vpow.pop %v287
    %v289 = vadd.f32 %v288, 1.0
    %v290 = vrcp.pop %v289
    %v291 = vmul.f32 1.0, %v290
    %v292 = vtanh.pop %v278
    %v293 = vxor.u32 %v279, 2147483648
    %v294 = vmul.f32 %v293, 1.442695
    %v295 = vpow.pop %v294
    %v296 = vadd.f32 %v295, 1.0
    %v297 = vrcp.pop %v296
    %v298 = vmul.f32 1.0, %v297
    %v299 = vmul.f32 %v291, %v64
    %v300 = vmul.f32 %v285, %v292
    %v301 = vadd.f32 %v299, %v300
    %v302 = vtanh.pop %v301
    %v303 = vmul.f32 %v298, %v302
    %v304 = vstv %s62
    %vm305 = vcmp.eq.s32.totalorder %v61, %v304
    %v306 = vsel %vm305, %v303, %v65
    %s307 = scalar_lea.vmem [#allocation4], 32
    %v308 = vld [vmem:[%s307] sm:$0xff]
    %v309 = vld [vmem:[%s307 + $0x8] sm:$0xff]
    %v310 = vld [vmem:[%s307 + $0x10] sm:$0xff]
    %v311 = vld [vmem:[%s307 + $0x18] sm:$0xff]
    %312 = vmatprep.subr.mxu0 %v71
    %313 = vmatpush1.msra.mxu0 %v70
    %314 = vmatprep.subr.mxu0 %v75
    %315 = vmatpush1.msra.mxu0 %v74
    %316 = vmatprep.subr.mxu0 %v79
    %317 = vmatpush1.msra.mxu0 %v78
    %318 = vmatprep.subr.mxu0 %v83
    %319 = vmatpush1.msra.mxu0 %v82
    %320 = vmatprep.subr.mxu0 %v87
    %321 = vmatpush1.msra.mxu0 %v86
    %322 = vmatprep.subr.mxu0 %v91
    %323 = vmatpush1.msra.mxu0 %v90
    %324 = vmatprep.subr.mxu0 %v95
    %325 = vmatpush1.msra.mxu0 %v94
    %326 = vmatprep.subr.mxu0 %v99
    %327 = vmatpush1.msra.mxu0 %v98
    %328 = vmatprep.subr.mxu0 %v103
    %329 = vmatpush1.msra.mxu0 %v102
    %330 = vmatprep.subr.mxu0 %v107
    %331 = vmatpush1.msra.mxu0 %v106
    %332 = vmatprep.subr.mxu0 %v111
    %333 = vmatpush1.msra.mxu0 %v110
    %334 = vmatprep.subr.mxu0 %v115
    %335 = vmatpush1.msra.mxu0 %v114
    %336 = vmatprep.subr.mxu0 %v119
    %337 = vmatpush1.msra.mxu0 %v118
    %338 = vmatprep.subr.mxu0 %v123
    %339 = vmatpush1.msra.mxu0 %v122
    %340 = vmatprep.subr.mxu0 %v127
    %341 = vmatpush1.msra.mxu0 %v126
    %342 = vmatprep.subr.mxu0 %v131
    %343 = vmatpush1.msra.mxu0 %v130
    %344 = vmatprep.subr.mxu0 0.0
    %345 = vmatpush1.msra.mxu0 0.0
    %346 = vmatprep.subr.mxu0 0.0
    %347 = vmatpush1.msra.mxu0 0.0
    %348 = vmatprep.subr.mxu0 0.0
    %349 = vmatpush1.msra.mxu0 0.0
    %350 = vmatprep.subr.mxu0 0.0
    %351 = vmatpush1.msra.mxu0 0.0
    %352 = vmatprep.subr.mxu0 0.0
    %353 = vmatpush1.msra.mxu0 0.0
    %354 = vmatprep.subr.mxu0 0.0
    %355 = vmatpush1.msra.mxu0 0.0
    %356 = vmatprep.subr.mxu0 0.0
    %357 = vmatpush1.msra.mxu0 0.0
    %358 = vmatprep.subr.mxu0 0.0
    %359 = vmatpush1.msra.mxu0 0.0
    %360 = vmatprep.subr.mxu0 0.0
    %361 = vmatpush1.msra.mxu0 0.0
    %362 = vmatprep.subr.mxu0 0.0
    %363 = vmatpush1.msra.mxu0 0.0
    %364 = vmatprep.subr.mxu0 0.0
    %365 = vmatpush1.msra.mxu0 0.0
    %366 = vmatprep.subr.mxu0 0.0
    %367 = vmatpush1.msra.mxu0 0.0
    %368 = vmatprep.subr.mxu0 0.0
    %369 = vmatpush1.msra.mxu0 0.0
    %370 = vmatprep.subr.mxu0 0.0
    %371 = vmatpush1.msra.mxu0 0.0
    %372 = vmatprep.subr.mxu0 0.0
    %373 = vmatpush1.msra.mxu0 0.0
    %374 = vmatprep.subr.mxu0 0.0
    %375 = vmatpush1.msra.mxu0 0.0
    %376 = vmatprep.mubr.f32.mxu0 0.0
    %377 = vmatmul.mubr.f32.gmra.mrb[0].mxu0 %v303
    %v378 = vpop.f32.mrb[0].mxu0
    %v379 = vadd.f32 0.0, %v378
    %v380 = vpop.f32.mrb[0].mxu0
    %v381 = vadd.f32 0.0, %v380
    %382 = vdwg.mxu0
    %383 = vmatprep.subr.mxu0 %v73
    %384 = vmatpush1.msra.mxu0 %v72
    %385 = vmatprep.subr.mxu0 %v77
    %386 = vmatpush1.msra.mxu0 %v76
    %387 = vmatprep.subr.mxu0 %v81
    %388 = vmatpush1.msra.mxu0 %v80
    %389 = vmatprep.subr.mxu0 %v85
    %390 = vmatpush1.msra.mxu0 %v84
    %391 = vmatprep.subr.mxu0 %v89
    %392 = vmatpush1.msra.mxu0 %v88
    %393 = vmatprep.subr.mxu0 %v93
    %394 = vmatpush1.msra.mxu0 %v92
    %395 = vmatprep.subr.mxu0 %v97
    %396 = vmatpush1.msra.mxu0 %v96
    %397 = vmatprep.subr.mxu0 %v101
    %398 = vmatpush1.msra.mxu0 %v100
    %399 = vmatprep.subr.mxu0 %v105
    %400 = vmatpush1.msra.mxu0 %v104
    %401 = vmatprep.subr.mxu0 %v109
    %402 = vmatpush1.msra.mxu0 %v108
    %403 = vmatprep.subr.mxu0 %v113
    %404 = vmatpush1.msra.mxu0 %v112
    %405 = vmatprep.subr.mxu0 %v117
    %406 = vmatpush1.msra.mxu0 %v116
    %407 = vmatprep.subr.mxu0 %v121
    %408 = vmatpush1.msra.mxu0 %v120
    %409 = vmatprep.subr.mxu0 %v125
    %410 = vmatpush1.msra.mxu0 %v124
    %411 = vmatprep.subr.mxu0 %v129
    %412 = vmatpush1.msra.mxu0 %v128
    %413 = vmatprep.subr.mxu0 %v133
    %414 = vmatpush1.msra.mxu0 %v132
    %415 = vmatprep.subr.mxu0 0.0
    %416 = vmatpush1.msra.mxu0 0.0
    %417 = vmatprep.subr.mxu0 0.0
    %418 = vmatpush1.msra.mxu0 0.0
    %419 = vmatprep.subr.mxu0 0.0
    %420 = vmatpush1.msra.mxu0 0.0
    %421 = vmatprep.subr.mxu0 0.0
    %422 = vmatpush1.msra.mxu0 0.0
    %423 = vmatprep.subr.mxu0 0.0
    %424 = vmatpush1.msra.mxu0 0.0
    %425 = vmatprep.subr.mxu0 0.0
    %426 = vmatpush1.msra.mxu0 0.0
    %427 = vmatprep.subr.mxu0 0.0
    %428 = vmatpush1.msra.mxu0 0.0
    %429 = vmatprep.subr.mxu0 0.0
    %430 = vmatpush1.msra.mxu0 0.0
    %431 = vmatprep.subr.mxu0 0.0
    %432 = vmatpush1.msra.mxu0 0.0
    %433 = vmatprep.subr.mxu0 0.0
    %434 = vmatpush1.msra.mxu0 0.0
    %435 = vmatprep.subr.mxu0 0.0
    %436 = vmatpush1.msra.mxu0 0.0
    %437 = vmatprep.subr.mxu0 0.0
    %438 = vmatpush1.msra.mxu0 0.0
    %439 = vmatprep.subr.mxu0 0.0
    %440 = vmatpush1.msra.mxu0 0.0
    %441 = vmatprep.subr.mxu0 0.0
    %442 = vmatpush1.msra.mxu0 0.0
    %443 = vmatprep.subr.mxu0 0.0
    %444 = vmatpush1.msra.mxu0 0.0
    %445 = vmatprep.subr.mxu0 0.0
    %446 = vmatpush1.msra.mxu0 0.0
    %447 = vmatprep.mubr.f32.mxu0 0.0
    %448 = vmatmul.mubr.f32.gmra.mrb[0].mxu0 %v303
    %v449 = vpop.f32.mrb[0].mxu0
    %v450 = vadd.f32 0.0, %v449
    %v451 = vpop.f32.mrb[0].mxu0
    %v452 = vadd.f32 0.0, %v451
    %453 = vdwg.mxu0
    %v454 = vadd.f32 %v308, %v379
    %v455 = vadd.f32 %v309, %v381
    %v456 = vadd.f32 %v310, %v450
    %v457 = vadd.f32 %v311, %v452
    %v458 = vxor.u32 %v454, 2147483648
    %v459 = vmul.f32 %v458, 1.442695
    %v460 = vpow.pop %v459
    %v461 = vadd.f32 %v460, 1.0
    %v462 = vrcp.pop %v461
    %v463 = vmul.f32 1.0, %v462
    %v464 = vxor.u32 %v455, 2147483648
    %v465 = vmul.f32 %v464, 1.442695
    %v466 = vpow.pop %v465
    %v467 = vadd.f32 %v466, 1.0
    %v468 = vrcp.pop %v467
    %v469 = vmul.f32 1.0, %v468
    %v470 = vtanh.pop %v456
    %v471 = vxor.u32 %v457, 2147483648
    %v472 = vmul.f32 %v471, 1.442695
    %v473 = vpow.pop %v472
    %v474 = vadd.f32 %v473, 1.0
    %v475 = vrcp.pop %v474
    %v476 = vmul.f32 1.0, %v475
    %v477 = vmul.f32 %v469, %v301
    %v478 = vmul.f32 %v463, %v470
    %v479 = vadd.f32 %v477, %v478
    %v480 = vtanh.pop %v479
    %v481 = vmul.f32 %v476, %v480
    %s482 = sadd.s32 %s62, 1
    %v483 = vstv %s482
    %vm484 = vcmp.eq.s32.totalorder %v61, %v483
    %v485 = vsel %vm484, %v481, %v306
    %s486 = scalar_lea.vmem [#allocation4], 64
    %v487 = vld [vmem:[%s486] sm:$0xff]
    %v488 = vld [vmem:[%s486 + $0x8] sm:$0xff]
    %v489 = vld [vmem:[%s486 + $0x10] sm:$0xff]
    %v490 = vld [vmem:[%s486 + $0x18] sm:$0xff]
    %491 = vmatprep.subr.mxu0 %v71
    %492 = vmatpush1.msra.mxu0 %v70
    %493 = vmatprep.subr.mxu0 %v75
    %494 = vmatpush1.msra.mxu0 %v74
    %495 = vmatprep.subr.mxu0 %v79
    %496 = vmatpush1.msra.mxu0 %v78
    %497 = vmatprep.subr.mxu0 %v83
    %498 = vmatpush1.msra.mxu0 %v82
    %499 = vmatprep.subr.mxu0 %v87
    %500 = vmatpush1.msra.mxu0 %v86
    %501 = vmatprep.subr.mxu0 %v91
    %502 = vmatpush1.msra.mxu0 %v90
    %503 = vmatprep.subr.mxu0 %v95
    %504 = vmatpush1.msra.mxu0 %v94
    %505 = vmatprep.subr.mxu0 %v99
    %506 = vmatpush1.msra.mxu0 %v98
    %507 = vmatprep.subr.mxu0 %v103
    %508 = vmatpush1.msra.mxu0 %v102
    %509 = vmatprep.subr.mxu0 %v107
    %510 = vmatpush1.msra.mxu0 %v106
    %511 = vmatprep.subr.mxu0 %v111
    %512 = vmatpush1.msra.mxu0 %v110
    %513 = vmatprep.subr.mxu0 %v115
    %514 = vmatpush1.msra.mxu0 %v114
    %515 = vmatprep.subr.mxu0 %v119
    %516 = vmatpush1.msra.mxu0 %v118
    %517 = vmatprep.subr.mxu0 %v123
    %518 = vmatpush1.msra.mxu0 %v122
    %519 = vmatprep.subr.mxu0 %v127
    %520 = vmatpush1.msra.mxu0 %v126
    %521 = vmatprep.subr.mxu0 %v131
    %522 = vmatpush1.msra.mxu0 %v130
    %523 = vmatprep.subr.mxu0 0.0
    %524 = vmatpush1.msra.mxu0 0.0
    %525 = vmatprep.subr.mxu0 0.0
    %526 = vmatpush1.msra.mxu0 0.0
    %527 = vmatprep.subr.mxu0 0.0
    %528 = vmatpush1.msra.mxu0 0.0
    %529 = vmatprep.subr.mxu0 0.0
    %530 = vmatpush1.msra.mxu0 0.0
    %531 = vmatprep.subr.mxu0 0.0
    %532 = vmatpush1.msra.mxu0 0.0
    %533 = vmatprep.subr.mxu0 0.0
    %534 = vmatpush1.msra.mxu0 0.0
    %535 = vmatprep.subr.mxu0 0.0
    %536 = vmatpush1.msra.mxu0 0.0
    %537 = vmatprep.subr.mxu0 0.0
    %538 = vmatpush1.msra.mxu0 0.0
    %539 = vmatprep.subr.mxu0 0.0
    %540 = vmatpush1.msra.mxu0 0.0
    %541 = vmatprep.subr.mxu0 0.0
    %542 = vmatpush1.msra.mxu0 0.0
    %543 = vmatprep.subr.mxu0 0.0
    %544 = vmatpush1.msra.mxu0 0.0
    %545 = vmatprep.subr.mxu0 0.0
    %546 = vmatpush1.msra.mxu0 0.0
    %547 = vmatprep.subr.mxu0 0.0
    %548 = vmatpush1.msra.mxu0 0.0
    %549 = vmatprep.subr.mxu0 0.0
    %550 = vmatpush1.msra.mxu0 0.0
    %551 = vmatprep.subr.mxu0 0.0
    %552 = vmatpush1.msra.mxu0 0.0
    %553 = vmatprep.subr.mxu0 0.0
    %554 = vmatpush1.msra.mxu0 0.0
    %555 = vmatprep.mubr.f32.mxu0 0.0
    %556 = vmatmul.mubr.f32.gmra.mrb[0].mxu0 %v481
    %v557 = vpop.f32.mrb[0].mxu0
    %v558 = vadd.f32 0.0, %v557
    %v559 = vpop.f32.mrb[0].mxu0
    %v560 = vadd.f32 0.0, %v559
    %561 = vdwg.mxu0
    %562 = vmatprep.subr.mxu0 %v73
    %563 = vmatpush1.msra.mxu0 %v72
    %564 = vmatprep.subr.mxu0 %v77
    %565 = vmatpush1.msra.mxu0 %v76
    %566 = vmatprep.subr.mxu0 %v81
    %567 = vmatpush1.msra.mxu0 %v80
    %568 = vmatprep.subr.mxu0 %v85
    %569 = vmatpush1.msra.mxu0 %v84
    %570 = vmatprep.subr.mxu0 %v89
    %571 = vmatpush1.msra.mxu0 %v88
    %572 = vmatprep.subr.mxu0 %v93
    %573 = vmatpush1.msra.mxu0 %v92
    %574 = vmatprep.subr.mxu0 %v97
    %575 = vmatpush1.msra.mxu0 %v96
    %576 = vmatprep.subr.mxu0 %v101
    %577 = vmatpush1.msra.mxu0 %v100
    %578 = vmatprep.subr.mxu0 %v105
    %579 = vmatpush1.msra.mxu0 %v104
    %580 = vmatprep.subr.mxu0 %v109
    %581 = vmatpush1.msra.mxu0 %v108
    %582 = vmatprep.subr.mxu0 %v113
    %583 = vmatpush1.msra.mxu0 %v112
    %584 = vmatprep.subr.mxu0 %v117
    %585 = vmatpush1.msra.mxu0 %v116
    %586 = vmatprep.subr.mxu0 %v121
    %587 = vmatpush1.msra.mxu0 %v120
    %588 = vmatprep.subr.mxu0 %v125
    %589 = vmatpush1.msra.mxu0 %v124
    %590 = vmatprep.subr.mxu0 %v129
    %591 = vmatpush1.msra.mxu0 %v128
    %592 = vmatprep.subr.mxu0 %v133
    %593 = vmatpush1.msra.mxu0 %v132
    %594 = vmatprep.subr.mxu0 0.0
    %595 = vmatpush1.msra.mxu0 0.0
    %596 = vmatprep.subr.mxu0 0.0
    %597 = vmatpush1.msra.mxu0 0.0
    %598 = vmatprep.subr.mxu0 0.0
    %599 = vmatpush1.msra.mxu0 0.0
    %600 = vmatprep.subr.mxu0 0.0
    %601 = vmatpush1.msra.mxu0 0.0
    %602 = vmatprep.subr.mxu0 0.0
    %603 = vmatpush1.msra.mxu0 0.0
    %604 = vmatprep.subr.mxu0 0.0
    %605 = vmatpush1.msra.mxu0 0.0
    %606 = vmatprep.subr.mxu0 0.0
    %607 = vmatpush1.msra.mxu0 0.0
    %608 = vmatprep.subr.mxu0 0.0
    %609 = vmatpush1.msra.mxu0 0.0
    %610 = vmatprep.subr.mxu0 0.0
    %611 = vmatpush1.msra.mxu0 0.0
    %612 = vmatprep.subr.mxu0 0.0
    %613 = vmatpush1.msra.mxu0 0.0
    %614 = vmatprep.subr.mxu0 0.0
    %615 = vmatpush1.msra.mxu0 0.0
    %616 = vmatprep.subr.mxu0 0.0
    %617 = vmatpush1.msra.mxu0 0.0
    %618 = vmatprep.subr.mxu0 0.0
    %619 = vmatpush1.msra.mxu0 0.0
    %620 = vmatprep.subr.mxu0 0.0
    %621 = vmatpush1.msra.mxu0 0.0
    %622 = vmatprep.subr.mxu0 0.0
    %623 = vmatpush1.msra.mxu0 0.0
    %624 = vmatprep.subr.mxu0 0.0
    %625 = vmatpush1.msra.mxu0 0.0
    %626 = vmatprep.mubr.f32.mxu0 0.0
    %627 = vmatmul.mubr.f32.gmra.mrb[0].mxu0 %v481
    %v628 = vpop.f32.mrb[0].mxu0
    %v629 = vadd.f32 0.0, %v628
    %v630 = vpop.f32.mrb[0].mxu0
    %v631 = vadd.f32 0.0, %v630
    %632 = vdwg.mxu0
    %v633 = vadd.f32 %v487, %v558
    %v634 = vadd.f32 %v488, %v560
    %v635 = vadd.f32 %v489, %v629
    %v636 = vadd.f32 %v490, %v631
    %v637 = vxor.u32 %v633, 2147483648
    %v638 = vmul.f32 %v637, 1.442695
    %v639 = vpow.pop %v638
    %v640 = vadd.f32 %v639, 1.0
    %v641 = vrcp.pop %v640
    %v642 = vmul.f32 1.0, %v641
    %v643 = vxor.u32 %v634, 2147483648
    %v644 = vmul.f32 %v643, 1.442695
    %v645 = vpow.pop %v644
    %v646 = vadd.f32 %v645, 1.0
    %v647 = vrcp.pop %v646
    %v648 = vmul.f32 1.0, %v647
    %v649 = vtanh.pop %v635
    %v650 = vxor.u32 %v636, 2147483648
    %v651 = vmul.f32 %v650, 1.442695
    %v652 = vpow.pop %v651
    %v653 = vadd.f32 %v652, 1.0
    %v654 = vrcp.pop %v653
    %v655 = vmul.f32 1.0, %v654
    %v656 = vmul.f32 %v648, %v479
    %v657 = vmul.f32 %v642, %v649
    %v658 = vadd.f32 %v656, %v657
    %v659 = vtanh.pop %v658
    %v660 = vmul.f32 %v655, %v659
    %s661 = sadd.s32 %s62, 2
    %v662 = vstv %s661
    %vm663 = vcmp.eq.s32.totalorder %v61, %v662
    %v664 = vsel %vm663, %v660, %v485
    %s665 = scalar_lea.vmem [#allocation4], 96
    %v666 = vld [vmem:[%s665] sm:$0xff]
    %v667 = vld [vmem:[%s665 + $0x8] sm:$0xff]
    %v668 = vld [vmem:[%s665 + $0x10] sm:$0xff]
    %v669 = vld [vmem:[%s665 + $0x18] sm:$0xff]
    %670 = vmatprep.subr.mxu0 %v71
    %671 = vmatpush1.msra.mxu0 %v70
    %672 = vmatprep.subr.mxu0 %v75
    %673 = vmatpush1.msra.mxu0 %v74
    %674 = vmatprep.subr.mxu0 %v79
    %675 = vmatpush1.msra.mxu0 %v78
    %676 = vmatprep.subr.mxu0 %v83
    %677 = vmatpush1.msra.mxu0 %v82
    %678 = vmatprep.subr.mxu0 %v87
    %679 = vmatpush1.msra.mxu0 %v86
    %680 = vmatprep.subr.mxu0 %v91
    %681 = vmatpush1.msra.mxu0 %v90
    %682 = vmatprep.subr.mxu0 %v95
    %683 = vmatpush1.msra.mxu0 %v94
    %684 = vmatprep.subr.mxu0 %v99
    %685 = vmatpush1.msra.mxu0 %v98
    %686 = vmatprep.subr.mxu0 %v103
    %687 = vmatpush1.msra.mxu0 %v102
    %688 = vmatprep.subr.mxu0 %v107
    %689 = vmatpush1.msra.mxu0 %v106
    %690 = vmatprep.subr.mxu0 %v111
    %691 = vmatpush1.msra.mxu0 %v110
    %692 = vmatprep.subr.mxu0 %v115
    %693 = vmatpush1.msra.mxu0 %v114
    %694 = vmatprep.subr.mxu0 %v119
    %695 = vmatpush1.msra.mxu0 %v118
    %696 = vmatprep.subr.mxu0 %v123
    %697 = vmatpush1.msra.mxu0 %v122
    %698 = vmatprep.subr.mxu0 %v127
    %699 = vmatpush1.msra.mxu0 %v126
    %700 = vmatprep.subr.mxu0 %v131
    %701 = vmatpush1.msra.mxu0 %v130
    %702 = vmatprep.subr.mxu0 0.0
    %703 = vmatpush1.msra.mxu0 0.0
    %704 = vmatprep.subr.mxu0 0.0
    %705 = vmatpush1.msra.mxu0 0.0
    %706 = vmatprep.subr.mxu0 0.0
    %707 = vmatpush1.msra.mxu0 0.0
    %708 = vmatprep.subr.mxu0 0.0
    %709 = vmatpush1.msra.mxu0 0.0
    %710 = vmatprep.subr.mxu0 0.0
    %711 = vmatpush1.msra.mxu0 0.0
    %712 = vmatprep.subr.mxu0 0.0
    %713 = vmatpush1.msra.mxu0 0.0
    %714 = vmatprep.subr.mxu0 0.0
    %715 = vmatpush1.msra.mxu0 0.0
    %716 = vmatprep.subr.mxu0 0.0
    %717 = vmatpush1.msra.mxu0 0.0
    %718 = vmatprep.subr.mxu0 0.0
    %719 = vmatpush1.msra.mxu0 0.0
    %720 = vmatprep.subr.mxu0 0.0
    %721 = vmatpush1.msra.mxu0 0.0
    %722 = vmatprep.subr.mxu0 0.0
    %723 = vmatpush1.msra.mxu0 0.0
    %724 = vmatprep.subr.mxu0 0.0
    %725 = vmatpush1.msra.mxu0 0.0
    %726 = vmatprep.subr.mxu0 0.0
    %727 = vmatpush1.msra.mxu0 0.0
    %728 = vmatprep.subr.mxu0 0.0
    %729 = vmatpush1.msra.mxu0 0.0
    %730 = vmatprep.subr.mxu0 0.0
    %731 = vmatpush1.msra.mxu0 0.0
    %732 = vmatprep.subr.mxu0 0.0
    %733 = vmatpush1.msra.mxu0 0.0
    %734 = vmatprep.mubr.f32.mxu0 0.0
    %735 = vmatmul.mubr.f32.gmra.mrb[0].mxu0 %v660
    %v736 = vpop.f32.mrb[0].mxu0
    %v737 = vadd.f32 0.0, %v736
    %v738 = vpop.f32.mrb[0].mxu0
    %v739 = vadd.f32 0.0, %v738
    %740 = vdwg.mxu0
    %741 = vmatprep.subr.mxu0 %v73
    %742 = vmatpush1.msra.mxu0 %v72
    %743 = vmatprep.subr.mxu0 %v77
    %744 = vmatpush1.msra.mxu0 %v76
    %745 = vmatprep.subr.mxu0 %v81
    %746 = vmatpush1.msra.mxu0 %v80
    %747 = vmatprep.subr.mxu0 %v85
    %748 = vmatpush1.msra.mxu0 %v84
    %749 = vmatprep.subr.mxu0 %v89
    %750 = vmatpush1.msra.mxu0 %v88
    %751 = vmatprep.subr.mxu0 %v93
    %752 = vmatpush1.msra.mxu0 %v92
    %753 = vmatprep.subr.mxu0 %v97
    %754 = vmatpush1.msra.mxu0 %v96
    %755 = vmatprep.subr.mxu0 %v101
    %756 = vmatpush1.msra.mxu0 %v100
    %757 = vmatprep.subr.mxu0 %v105
    %758 = vmatpush1.msra.mxu0 %v104
    %759 = vmatprep.subr.mxu0 %v109
    %760 = vmatpush1.msra.mxu0 %v108
    %761 = vmatprep.subr.mxu0 %v113
    %762 = vmatpush1.msra.mxu0 %v112
    %763 = vmatprep.subr.mxu0 %v117
    %764 = vmatpush1.msra.mxu0 %v116
    %765 = vmatprep.subr.mxu0 %v121
    %766 = vmatpush1.msra.mxu0 %v120
    %767 = vmatprep.subr.mxu0 %v125
    %768 = vmatpush1.msra.mxu0 %v124
    %769 = vmatprep.subr.mxu0 %v129
    %770 = vmatpush1.msra.mxu0 %v128
    %771 = vmatprep.subr.mxu0 %v133
    %772 = vmatpush1.msra.mxu0 %v132
    %773 = vmatprep.subr.mxu0 0.0
    %774 = vmatpush1.msra.mxu0 0.0
    %775 = vmatprep.subr.mxu0 0.0
    %776 = vmatpush1.msra.mxu0 0.0
    %777 = vmatprep.subr.mxu0 0.0
    %778 = vmatpush1.msra.mxu0 0.0
    %779 = vmatprep.subr.mxu0 0.0
    %780 = vmatpush1.msra.mxu0 0.0
    %781 = vmatprep.subr.mxu0 0.0
    %782 = vmatpush1.msra.mxu0 0.0
    %783 = vmatprep.subr.mxu0 0.0
    %784 = vmatpush1.msra.mxu0 0.0
    %785 = vmatprep.subr.mxu0 0.0
    %786 = vmatpush1.msra.mxu0 0.0
    %787 = vmatprep.subr.mxu0 0.0
    %788 = vmatpush1.msra.mxu0 0.0
    %789 = vmatprep.subr.mxu0 0.0
    %790 = vmatpush1.msra.mxu0 0.0
    %791 = vmatprep.subr.mxu0 0.0
    %792 = vmatpush1.msra.mxu0 0.0
    %793 = vmatprep.subr.mxu0 0.0
    %794 = vmatpush1.msra.mxu0 0.0
    %795 = vmatprep.subr.mxu0 0.0
    %796 = vmatpush1.msra.mxu0 0.0
    %797 = vmatprep.subr.mxu0 0.0
    %798 = vmatpush1.msra.mxu0 0.0
    %799 = vmatprep.subr.mxu0 0.0
    %800 = vmatpush1.msra.mxu0 0.0
    %801 = vmatprep.subr.mxu0 0.0
    %802 = vmatpush1.msra.mxu0 0.0
    %803 = vmatprep.subr.mxu0 0.0
    %804 = vmatpush1.msra.mxu0 0.0
    %805 = vmatprep.mubr.f32.mxu0 0.0
    %806 = vmatmul.mubr.f32.gmra.mrb[0].mxu0 %v660
    %v807 = vpop.f32.mrb[0].mxu0
    %v808 = vadd.f32 0.0, %v807
    %v809 = vpop.f32.mrb[0].mxu0
    %v810 = vadd.f32 0.0, %v809
    %811 = vdwg.mxu0
    %v812 = vadd.f32 %v666, %v737
    %v813 = vadd.f32 %v667, %v739
    %v814 = vadd.f32 %v668, %v808
    %v815 = vadd.f32 %v669, %v810
    %v816 = vxor.u32 %v812, 2147483648
    %v817 = vmul.f32 %v816, 1.442695
    %v818 = vpow.pop %v817
    %v819 = vadd.f32 %v818, 1.0
    %v820 = vrcp.pop %v819
    %v821 = vmul.f32 1.0, %v820
    %v822 = vxor.u32 %v813, 2147483648
    %v823 = vmul.f32 %v822, 1.442695
    %v824 = vpow.pop %v823
    %v825 = vadd.f32 %v824, 1.0
    %v826 = vrcp.pop %v825
    %v827 = vmul.f32 1.0, %v826
    %v828 = vtanh.pop %v814
    %v829 = vxor.u32 %v815, 2147483648
    %v830 = vmul.f32 %v829, 1.442695
    %v831 = vpow.pop %v830
    %v832 = vadd.f32 %v831, 1.0
    %v833 = vrcp.pop %v832
    %v834 = vmul.f32 1.0, %v833
    %v835 = vmul.f32 %v827, %v658
    %v836 = vmul.f32 %v821, %v828
    %v837 = vadd.f32 %v835, %v836
    %v838 = vtanh.pop %v837
    %v839 = vmul.f32 %v834, %v838
    %s840 = sadd.s32 %s62, 3
    %v841 = vstv %s840
    %vm842 = vcmp.eq.s32.totalorder %v61, %v841
    %v843 = vsel %vm842, %v839, %v664
    %s844 = scalar_lea.vmem [#allocation4], 128
    %v845 = vld [vmem:[%s844] sm:$0xff]
    %v846 = vld [vmem:[%s844 + $0x8] sm:$0xff]
    %v847 = vld [vmem:[%s844 + $0x10] sm:$0xff]
    %v848 = vld [vmem:[%s844 + $0x18] sm:$0xff]
    %849 = vmatprep.subr.mxu0 %v71
    %850 = vmatpush1.msra.mxu0 %v70
    %851 = vmatprep.subr.mxu0 %v75
    %852 = vmatpush1.msra.mxu0 %v74
    %853 = vmatprep.subr.mxu0 %v79
    %854 = vmatpush1.msra.mxu0 %v78
    %855 = vmatprep.subr.mxu0 %v83
    %856 = vmatpush1.msra.mxu0 %v82
    %857 = vmatprep.subr.mxu0 %v87
    %858 = vmatpush1.msra.mxu0 %v86
    %859 = vmatprep.subr.mxu0 %v91
    %860 = vmatpush1.msra.mxu0 %v90
    %861 = vmatprep.subr.mxu0 %v95
    %862 = vmatpush1.msra.mxu0 %v94
    %863 = vmatprep.subr.mxu0 %v99
    %864 = vmatpush1.msra.mxu0 %v98
    %865 = vmatprep.subr.mxu0 %v103
    %866 = vmatpush1.msra.mxu0 %v102
    %867 = vmatprep.subr.mxu0 %v107
    %868 = vmatpush1.msra.mxu0 %v106
    %869 = vmatprep.subr.mxu0 %v111
    %870 = vmatpush1.msra.mxu0 %v110
    %871 = vmatprep.subr.mxu0 %v115
    %872 = vmatpush1.msra.mxu0 %v114
    %873 = vmatprep.subr.mxu0 %v119
    %874 = vmatpush1.msra.mxu0 %v118
    %875 = vmatprep.subr.mxu0 %v123
    %876 = vmatpush1.msra.mxu0 %v122
    %877 = vmatprep.subr.mxu0 %v127
    %878 = vmatpush1.msra.mxu0 %v126
    %879 = vmatprep.subr.mxu0 %v131
    %880 = vmatpush1.msra.mxu0 %v130
    %881 = vmatprep.subr.mxu0 0.0
    %882 = vmatpush1.msra.mxu0 0.0
    %883 = vmatprep.subr.mxu0 0.0
    %884 = vmatpush1.msra.mxu0 0.0
    %885 = vmatprep.subr.mxu0 0.0
    %886 = vmatpush1.msra.mxu0 0.0
    %887 = vmatprep.subr.mxu0 0.0
    %888 = vmatpush1.msra.mxu0 0.0
    %889 = vmatprep.subr.mxu0 0.0
    %890 = vmatpush1.msra.mxu0 0.0
    %891 = vmatprep.subr.mxu0 0.0
    %892 = vmatpush1.msra.mxu0 0.0
    %893 = vmatprep.subr.mxu0 0.0
    %894 = vmatpush1.msra.mxu0 0.0
    %895 = vmatprep.subr.mxu0 0.0
    %896 = vmatpush1.msra.mxu0 0.0
    %897 = vmatprep.subr.mxu0 0.0
    %898 = vmatpush1.msra.mxu0 0.0
    %899 = vmatprep.subr.mxu0 0.0
    %900 = vmatpush1.msra.mxu0 0.0
    %901 = vmatprep.subr.mxu0 0.0
    %902 = vmatpush1.msra.mxu0 0.0
    %903 = vmatprep.subr.mxu0 0.0
    %904 = vmatpush1.msra.mxu0 0.0
    %905 = vmatprep.subr.mxu0 0.0
    %906 = vmatpush1.msra.mxu0 0.0
    %907 = vmatprep.subr.mxu0 0.0
    %908 = vmatpush1.msra.mxu0 0.0
    %909 = vmatprep.subr.mxu0 0.0
    %910 = vmatpush1.msra.mxu0 0.0
    %911 = vmatprep.subr.mxu0 0.0
    %912 = vmatpush1.msra.mxu0 0.0
    %913 = vmatprep.mubr.f32.mxu0 0.0
    %914 = vmatmul.mubr.f32.gmra.mrb[0].mxu0 %v839
    %v915 = vpop.f32.mrb[0].mxu0
    %v916 = vadd.f32 0.0, %v915
    %v917 = vpop.f32.mrb[0].mxu0
    %v918 = vadd.f32 0.0, %v917
    %919 = vdwg.mxu0
    %920 = vmatprep.subr.mxu0 %v73
    %921 = vmatpush1.msra.mxu0 %v72
    %922 = vmatprep.subr.mxu0 %v77
    %923 = vmatpush1.msra.mxu0 %v76
    %924 = vmatprep.subr.mxu0 %v81
    %925 = vmatpush1.msra.mxu0 %v80
    %926 = vmatprep.subr.mxu0 %v85
    %927 = vmatpush1.msra.mxu0 %v84
    %928 = vmatprep.subr.mxu0 %v89
    %929 = vmatpush1.msra.mxu0 %v88
    %930 = vmatprep.subr.mxu0 %v93
    %931 = vmatpush1.msra.mxu0 %v92
    %932 = vmatprep.subr.mxu0 %v97
    %933 = vmatpush1.msra.mxu0 %v96
    %934 = vmatprep.subr.mxu0 %v101
    %935 = vmatpush1.msra.mxu0 %v100
    %936 = vmatprep.subr.mxu0 %v105
    %937 = vmatpush1.msra.mxu0 %v104
    %938 = vmatprep.subr.mxu0 %v109
    %939 = vmatpush1.msra.mxu0 %v108
    %940 = vmatprep.subr.mxu0 %v113
    %941 = vmatpush1.msra.mxu0 %v112
    %942 = vmatprep.subr.mxu0 %v117
    %943 = vmatpush1.msra.mxu0 %v116
    %944 = vmatprep.subr.mxu0 %v121
    %945 = vmatpush1.msra.mxu0 %v120
    %946 = vmatprep.subr.mxu0 %v125
    %947 = vmatpush1.msra.mxu0 %v124
    %948 = vmatprep.subr.mxu0 %v129
    %949 = vmatpush1.msra.mxu0 %v128
    %950 = vmatprep.subr.mxu0 %v133
    %951 = vmatpush1.msra.mxu0 %v132
    %952 = vmatprep.subr.mxu0 0.0
    %953 = vmatpush1.msra.mxu0 0.0
    %954 = vmatprep.subr.mxu0 0.0
    %955 = vmatpush1.msra.mxu0 0.0
    %956 = vmatprep.subr.mxu0 0.0
    %957 = vmatpush1.msra.mxu0 0.0
    %958 = vmatprep.subr.mxu0 0.0
    %959 = vmatpush1.msra.mxu0 0.0
    %960 = vmatprep.subr.mxu0 0.0
    %961 = vmatpush1.msra.mxu0 0.0
    %962 = vmatprep.subr.mxu0 0.0
    %963 = vmatpush1.msra.mxu0 0.0
    %964 = vmatprep.subr.mxu0 0.0
    %965 = vmatpush1.msra.mxu0 0.0
    %966 = vmatprep.subr.mxu0 0.0
    %967 = vmatpush1.msra.mxu0 0.0
    %968 = vmatprep.subr.mxu0 0.0
    %969 = vmatpush1.msra.mxu0 0.0
    %970 = vmatprep.subr.mxu0 0.0
    %971 = vmatpush1.msra.mxu0 0.0
    %972 = vmatprep.subr.mxu0 0.0
    %973 = vmatpush1.msra.mxu0 0.0
    %974 = vmatprep.subr.mxu0 0.0
    %975 = vmatpush1.msra.mxu0 0.0
    %976 = vmatprep.subr.mxu0 0.0
    %977 = vmatpush1.msra.mxu0 0.0
    %978 = vmatprep.subr.mxu0 0.0
    %979 = vmatpush1.msra.mxu0 0.0
    %980 = vmatprep.subr.mxu0 0.0
    %981 = vmatpush1.msra.mxu0 0.0
    %982 = vmatprep.subr.mxu0 0.0
    %983 = vmatpush1.msra.mxu0 0.0
    %984 = vmatprep.mubr.f32.mxu0 0.0
    %985 = vmatmul.mubr.f32.gmra.mrb[0].mxu0 %v839
    %v986 = vpop.f32.mrb[0].mxu0
    %v987 = vadd.f32 0.0, %v986
    %v988 = vpop.f32.mrb[0].mxu0
    %v989 = vadd.f32 0.0, %v988
    %990 = vdwg.mxu0
    %v991 = vadd.f32 %v845, %v916
    %v992 = vadd.f32 %v846, %v918
    %v993 = vadd.f32 %v847, %v987
    %v994 = vadd.f32 %v848, %v989
    %v995 = vxor.u32 %v991, 2147483648
    %v996 = vmul.f32 %v995, 1.442695
    %v997 = vpow.pop %v996
    %v998 = vadd.f32 %v997, 1.0
    %v999 = vrcp.pop %v998
    %v1000 = vmul.f32 1.0, %v999
    %v1001 = vxor.u32 %v992, 2147483648
    %v1002 = vmul.f32 %v1001, 1.442695
    %v1003 = vpow.pop %v1002
    %v1004 = vadd.f32 %v1003, 1.0
    %v1005 = vrcp.pop %v1004
    %v1006 = vmul.f32 1.0, %v1005
    %v1007 = vtanh.pop %v993
    %v1008 = vxor.u32 %v994, 2147483648
    %v1009 = vmul.f32 %v1008, 1.442695
    %v1010 = vpow.pop %v1009
    %v1011 = vadd.f32 %v1010, 1.0
    %v1012 = vrcp.pop %v1011
    %v1013 = vmul.f32 1.0, %v1012
    %v1014 = vmul.f32 %v1006, %v837
    %v1015 = vmul.f32 %v1000, %v1007
    %v1016 = vadd.f32 %v1014, %v1015
    %v1017 = vtanh.pop %v1016
    %v1018 = vmul.f32 %v1013, %v1017
    %s1019 = sadd.s32 %s62, 4
    %v1020 = vstv %s1019
    %vm1021 = vcmp.eq.s32.totalorder %v61, %v1020
    %v1022 = vsel %vm1021, %v1018, %v843
    %s1023 = scalar_lea.vmem [#allocation4], 160
    %v1024 = vld [vmem:[%s1023] sm:$0xff]
    %v1025 = vld [vmem:[%s1023 + $0x8] sm:$0xff]
    %v1026 = vld [vmem:[%s1023 + $0x10] sm:$0xff]
    %v1027 = vld [vmem:[%s1023 + $0x18] sm:$0xff]
    %1028 = vmatprep.subr.mxu0 %v71
    %1029 = vmatpush1.msra.mxu0 %v70
    %1030 = vmatprep.subr.mxu0 %v75
    %1031 = vmatpush1.msra.mxu0 %v74
    %1032 = vmatprep.subr.mxu0 %v79
    %1033 = vmatpush1.msra.mxu0 %v78
    %1034 = vmatprep.subr.mxu0 %v83
    %1035 = vmatpush1.msra.mxu0 %v82
    %1036 = vmatprep.subr.mxu0 %v87
    %1037 = vmatpush1.msra.mxu0 %v86
    %1038 = vmatprep.subr.mxu0 %v91
    %1039 = vmatpush1.msra.mxu0 %v90
    %1040 = vmatprep.subr.mxu0 %v95
    %1041 = vmatpush1.msra.mxu0 %v94
    %1042 = vmatprep.subr.mxu0 %v99
    %1043 = vmatpush1.msra.mxu0 %v98
    %1044 = vmatprep.subr.mxu0 %v103
    %1045 = vmatpush1.msra.mxu0 %v102
    %1046 = vmatprep.subr.mxu0 %v107
    %1047 = vmatpush1.msra.mxu0 %v106
    %1048 = vmatprep.subr.mxu0 %v111
    %1049 = vmatpush1.msra.mxu0 %v110
    %1050 = vmatprep.subr.mxu0 %v115
    %1051 = vmatpush1.msra.mxu0 %v114
    %1052 = vmatprep.subr.mxu0 %v119
    %1053 = vmatpush1.msra.mxu0 %v118
    %1054 = vmatprep.subr.mxu0 %v123
    %1055 = vmatpush1.msra.mxu0 %v122
    %1056 = vmatprep.subr.mxu0 %v127
    %1057 = vmatpush1.msra.mxu0 %v126
    %1058 = vmatprep.subr.mxu0 %v131
    %1059 = vmatpush1.msra.mxu0 %v130
    %1060 = vmatprep.subr.mxu0 0.0
    %1061 = vmatpush1.msra.mxu0 0.0
    %1062 = vmatprep.subr.mxu0 0.0
    %1063 = vmatpush1.msra.mxu0 0.0
    %1064 = vmatprep.subr.mxu0 0.0
    %1065 = vmatpush1.msra.mxu0 0.0
    %1066 = vmatprep.subr.mxu0 0.0
    %1067 = vmatpush1.msra.mxu0 0.0
    %1068 = vmatprep.subr.mxu0 0.0
    %1069 = vmatpush1.msra.mxu0 0.0
    %1070 = vmatprep.subr.mxu0 0.0
    %1071 = vmatpush1.msra.mxu0 0.0
    %1072 = vmatprep.subr.mxu0 0.0
    %1073 = vmatpush1.msra.mxu0 0.0
    %1074 = vmatprep.subr.mxu0 0.0
    %1075 = vmatpush1.msra.mxu0 0.0
    %1076 = vmatprep.subr.mxu0 0.0
    %1077 = vmatpush1.msra.mxu0 0.0
    %1078 = vmatprep.subr.mxu0 0.0
    %1079 = vmatpush1.msra.mxu0 0.0
    %1080 = vmatprep.subr.mxu0 0.0
    %1081 = vmatpush1.msra.mxu0 0.0
    %1082 = vmatprep.subr.mxu0 0.0
    %1083 = vmatpush1.msra.mxu0 0.0
    %1084 = vmatprep.subr.mxu0 0.0
    %1085 = vmatpush1.msra.mxu0 0.0
    %1086 = vmatprep.subr.mxu0 0.0
    %1087 = vmatpush1.msra.mxu0 0.0
    %1088 = vmatprep.subr.mxu0 0.0
    %1089 = vmatpush1.msra.mxu0 0.0
    %1090 = vmatprep.subr.mxu0 0.0
    %1091 = vmatpush1.msra.mxu0 0.0
    %1092 = vmatprep.mubr.f32.mxu0 0.0
    %1093 = vmatmul.mubr.f32.gmra.mrb[0].mxu0 %v1018
    %v1094 = vpop.f32.mrb[0].mxu0
    %v1095 = vadd.f32 0.0, %v1094
    %v1096 = vpop.f32.mrb[0].mxu0
    %v1097 = vadd.f32 0.0, %v1096
    %1098 = vdwg.mxu0
    %1099 = vmatprep.subr.mxu0 %v73
    %1100 = vmatpush1.msra.mxu0 %v72
    %1101 = vmatprep.subr.mxu0 %v77
    %1102 = vmatpush1.msra.mxu0 %v76
    %1103 = vmatprep.subr.mxu0 %v81
    %1104 = vmatpush1.msra.mxu0 %v80
    %1105 = vmatprep.subr.mxu0 %v85
    %1106 = vmatpush1.msra.mxu0 %v84
    %1107 = vmatprep.subr.mxu0 %v89
    %1108 = vmatpush1.msra.mxu0 %v88
    %1109 = vmatprep.subr.mxu0 %v93
    %1110 = vmatpush1.msra.mxu0 %v92
    %1111 = vmatprep.subr.mxu0 %v97
    %1112 = vmatpush1.msra.mxu0 %v96
    %1113 = vmatprep.subr.mxu0 %v101
    %1114 = vmatpush1.msra.mxu0 %v100
    %1115 = vmatprep.subr.mxu0 %v105
    %1116 = vmatpush1.msra.mxu0 %v104
    %1117 = vmatprep.subr.mxu0 %v109
    %1118 = vmatpush1.msra.mxu0 %v108
    %1119 = vmatprep.subr.mxu0 %v113
    %1120 = vmatpush1.msra.mxu0 %v112
    %1121 = vmatprep.subr.mxu0 %v117
    %1122 = vmatpush1.msra.mxu0 %v116
    %1123 = vmatprep.subr.mxu0 %v121
    %1124 = vmatpush1.msra.mxu0 %v120
    %1125 = vmatprep.subr.mxu0 %v125
    %1126 = vmatpush1.msra.mxu0 %v124
    %1127 = vmatprep.subr.mxu0 %v129
    %1128 = vmatpush1.msra.mxu0 %v128
    %1129 = vmatprep.subr.mxu0 %v133
    %1130 = vmatpush1.msra.mxu0 %v132
    %1131 = vmatprep.subr.mxu0 0.0
    %1132 = vmatpush1.msra.mxu0 0.0
    %1133 = vmatprep.subr.mxu0 0.0
    %1134 = vmatpush1.msra.mxu0 0.0
    %1135 = vmatprep.subr.mxu0 0.0
    %1136 = vmatpush1.msra.mxu0 0.0
    %1137 = vmatprep.subr.mxu0 0.0
    %1138 = vmatpush1.msra.mxu0 0.0
    %1139 = vmatprep.subr.mxu0 0.0
    %1140 = vmatpush1.msra.mxu0 0.0
    %1141 = vmatprep.subr.mxu0 0.0
    %1142 = vmatpush1.msra.mxu0 0.0
    %1143 = vmatprep.subr.mxu0 0.0
    %1144 = vmatpush1.msra.mxu0 0.0
    %1145 = vmatprep.subr.mxu0 0.0
    %1146 = vmatpush1.msra.mxu0 0.0
    %1147 = vmatprep.subr.mxu0 0.0
    %1148 = vmatpush1.msra.mxu0 0.0
    %1149 = vmatprep.subr.mxu0 0.0
    %1150 = vmatpush1.msra.mxu0 0.0
    %1151 = vmatprep.subr.mxu0 0.0
    %1152 = vmatpush1.msra.mxu0 0.0
    %1153 = vmatprep.subr.mxu0 0.0
    %1154 = vmatpush1.msra.mxu0 0.0
    %1155 = vmatprep.subr.mxu0 0.0
    %1156 = vmatpush1.msra.mxu0 0.0
    %1157 = vmatprep.subr.mxu0 0.0
    %1158 = vmatpush1.msra.mxu0 0.0
    %1159 = vmatprep.subr.mxu0 0.0
    %1160 = vmatpush1.msra.mxu0 0.0
    %1161 = vmatprep.subr.mxu0 0.0
    %1162 = vmatpush1.msra.mxu0 0.0
    %1163 = vmatprep.mubr.f32.mxu0 0.0
    %1164 = vmatmul.mubr.f32.gmra.mrb[0].mxu0 %v1018
    %v1165 = vpop.f32.mrb[0].mxu0
    %v1166 = vadd.f32 0.0, %v1165
    %v1167 = vpop.f32.mrb[0].mxu0
    %v1168 = vadd.f32 0.0, %v1167
    %1169 = vdwg.mxu0
    %v1170 = vadd.f32 %v1024, %v1095
    %v1171 = vadd.f32 %v1025, %v1097
    %v1172 = vadd.f32 %v1026, %v1166
    %v1173 = vadd.f32 %v1027, %v1168
    %v1174 = vxor.u32 %v1170, 2147483648
    %v1175 = vmul.f32 %v1174, 1.442695
    %v1176 = vpow.pop %v1175
    %v1177 = vadd.f32 %v1176, 1.0
    %v1178 = vrcp.pop %v1177
    %v1179 = vmul.f32 1.0, %v1178
    %v1180 = vxor.u32 %v1171, 2147483648
    %v1181 = vmul.f32 %v1180, 1.442695
    %v1182 = vpow.pop %v1181
    %v1183 = vadd.f32 %v1182, 1.0
    %v1184 = vrcp.pop %v1183
    %v1185 = vmul.f32 1.0, %v1184
    %v1186 = vtanh.pop %v1172
    %v1187 = vxor.u32 %v1173, 2147483648
    %v1188 = vmul.f32 %v1187, 1.442695
    %v1189 = vpow.pop %v1188
    %v1190 = vadd.f32 %v1189, 1.0
    %v1191 = vrcp.pop %v1190
    %v1192 = vmul.f32 1.0, %v1191
    %v1193 = vmul.f32 %v1185, %v1016
    %v1194 = vmul.f32 %v1179, %v1186
    %v1195 = vadd.f32 %v1193, %v1194
    %v1196 = vtanh.pop %v1195
    %v1197 = vmul.f32 %v1192, %v1196
    %s1198 = sadd.s32 %s62, 5
    %v1199 = vstv %s1198
    %vm1200 = vcmp.eq.s32.totalorder %v61, %v1199
    %v1201 = vsel %vm1200, %v1197, %v1022
    %s1202 = scalar_lea.vmem [#allocation4], 192
    %v1203 = vld [vmem:[%s1202] sm:$0xff]
    %v1204 = vld [vmem:[%s1202 + $0x8] sm:$0xff]
    %v1205 = vld [vmem:[%s1202 + $0x10] sm:$0xff]
    %v1206 = vld [vmem:[%s1202 + $0x18] sm:$0xff]
    %1207 = vmatprep.subr.mxu0 %v71
    %1208 = vmatpush1.msra.mxu0 %v70
    %1209 = vmatprep.subr.mxu0 %v75
    %1210 = vmatpush1.msra.mxu0 %v74
    %1211 = vmatprep.subr.mxu0 %v79
    %1212 = vmatpush1.msra.mxu0 %v78
    %1213 = vmatprep.subr.mxu0 %v83
    %1214 = vmatpush1.msra.mxu0 %v82
    %1215 = vmatprep.subr.mxu0 %v87
    %1216 = vmatpush1.msra.mxu0 %v86
    %1217 = vmatprep.subr.mxu0 %v91
    %1218 = vmatpush1.msra.mxu0 %v90
    %1219 = vmatprep.subr.mxu0 %v95
    %1220 = vmatpush1.msra.mxu0 %v94
    %1221 = vmatprep.subr.mxu0 %v99
    %1222 = vmatpush1.msra.mxu0 %v98
    %1223 = vmatprep.subr.mxu0 %v103
    %1224 = vmatpush1.msra.mxu0 %v102
    %1225 = vmatprep.subr.mxu0 %v107
    %1226 = vmatpush1.msra.mxu0 %v106
    %1227 = vmatprep.subr.mxu0 %v111
    %1228 = vmatpush1.msra.mxu0 %v110
    %1229 = vmatprep.subr.mxu0 %v115
    %1230 = vmatpush1.msra.mxu0 %v114
    %1231 = vmatprep.subr.mxu0 %v119
    %1232 = vmatpush1.msra.mxu0 %v118
    %1233 = vmatprep.subr.mxu0 %v123
    %1234 = vmatpush1.msra.mxu0 %v122
    %1235 = vmatprep.subr.mxu0 %v127
    %1236 = vmatpush1.msra.mxu0 %v126
    %1237 = vmatprep.subr.mxu0 %v131
    %1238 = vmatpush1.msra.mxu0 %v130
    %1239 = vmatprep.subr.mxu0 0.0
    %1240 = vmatpush1.msra.mxu0 0.0
    %1241 = vmatprep.subr.mxu0 0.0
    %1242 = vmatpush1.msra.mxu0 0.0
    %1243 = vmatprep.subr.mxu0 0.0
    %1244 = vmatpush1.msra.mxu0 0.0
    %1245 = vmatprep.subr.mxu0 0.0
    %1246 = vmatpush1.msra.mxu0 0.0
    %1247 = vmatprep.subr.mxu0 0.0
    %1248 = vmatpush1.msra.mxu0 0.0
    %1249 = vmatprep.subr.mxu0 0.0
    %1250 = vmatpush1.msra.mxu0 0.0
    %1251 = vmatprep.subr.mxu0 0.0
    %1252 = vmatpush1.msra.mxu0 0.0
    %1253 = vmatprep.subr.mxu0 0.0
    %1254 = vmatpush1.msra.mxu0 0.0
    %1255 = vmatprep.subr.mxu0 0.0
    %1256 = vmatpush1.msra.mxu0 0.0
    %1257 = vmatprep.subr.mxu0 0.0
    %1258 = vmatpush1.msra.mxu0 0.0
    %1259 = vmatprep.subr.mxu0 0.0
    %1260 = vmatpush1.msra.mxu0 0.0
    %1261 = vmatprep.subr.mxu0 0.0
    %1262 = vmatpush1.msra.mxu0 0.0
    %1263 = vmatprep.subr.mxu0 0.0
    %1264 = vmatpush1.msra.mxu0 0.0
    %1265 = vmatprep.subr.mxu0 0.0
    %1266 = vmatpush1.msra.mxu0 0.0
    %1267 = vmatprep.subr.mxu0 0.0
    %1268 = vmatpush1.msra.mxu0 0.0
    %1269 = vmatprep.subr.mxu0 0.0
    %1270 = vmatpush1.msra.mxu0 0.0
    %1271 = vmatprep.mubr.f32.mxu0 0.0
    %1272 = vmatmul.mubr.f32.gmra.mrb[0].mxu0 %v1197
    %v1273 = vpop.f32.mrb[0].mxu0
    %v1274 = vadd.f32 0.0, %v1273
    %v1275 = vpop.f32.mrb[0].mxu0
    %v1276 = vadd.f32 0.0, %v1275
    %1277 = vdwg.mxu0
    %1278 = vmatprep.subr.mxu0 %v73
    %1279 = vmatpush1.msra.mxu0 %v72
    %1280 = vmatprep.subr.mxu0 %v77
    %1281 = vmatpush1.msra.mxu0 %v76
    %1282 = vmatprep.subr.mxu0 %v81
    %1283 = vmatpush1.msra.mxu0 %v80
    %1284 = vmatprep.subr.mxu0 %v85
    %1285 = vmatpush1.msra.mxu0 %v84
    %1286 = vmatprep.subr.mxu0 %v89
    %1287 = vmatpush1.msra.mxu0 %v88
    %1288 = vmatprep.subr.mxu0 %v93
    %1289 = vmatpush1.msra.mxu0 %v92
    %1290 = vmatprep.subr.mxu0 %v97
    %1291 = vmatpush1.msra.mxu0 %v96
    %1292 = vmatprep.subr.mxu0 %v101
    %1293 = vmatpush1.msra.mxu0 %v100
    %1294 = vmatprep.subr.mxu0 %v105
    %1295 = vmatpush1.msra.mxu0 %v104
    %1296 = vmatprep.subr.mxu0 %v109
    %1297 = vmatpush1.msra.mxu0 %v108
    %1298 = vmatprep.subr.mxu0 %v113
    %1299 = vmatpush1.msra.mxu0 %v112
    %1300 = vmatprep.subr.mxu0 %v117
    %1301 = vmatpush1.msra.mxu0 %v116
    %1302 = vmatprep.subr.mxu0 %v121
    %1303 = vmatpush1.msra.mxu0 %v120
    %1304 = vmatprep.subr.mxu0 %v125
    %1305 = vmatpush1.msra.mxu0 %v124
    %1306 = vmatprep.subr.mxu0 %v129
    %1307 = vmatpush1.msra.mxu0 %v128
    %1308 = vmatprep.subr.mxu0 %v133
    %1309 = vmatpush1.msra.mxu0 %v132
    %1310 = vmatprep.subr.mxu0 0.0
    %1311 = vmatpush1.msra.mxu0 0.0
    %1312 = vmatprep.subr.mxu0 0.0
    %1313 = vmatpush1.msra.mxu0 0.0
    %1314 = vmatprep.subr.mxu0 0.0
    %1315 = vmatpush1.msra.mxu0 0.0
    %1316 = vmatprep.subr.mxu0 0.0
    %1317 = vmatpush1.msra.mxu0 0.0
    %1318 = vmatprep.subr.mxu0 0.0
    %1319 = vmatpush1.msra.mxu0 0.0
    %1320 = vmatprep.subr.mxu0 0.0
    %1321 = vmatpush1.msra.mxu0 0.0
    %1322 = vmatprep.subr.mxu0 0.0
    %1323 = vmatpush1.msra.mxu0 0.0
    %1324 = vmatprep.subr.mxu0 0.0
    %1325 = vmatpush1.msra.mxu0 0.0
    %1326 = vmatprep.subr.mxu0 0.0
    %1327 = vmatpush1.msra.mxu0 0.0
    %1328 = vmatprep.subr.mxu0 0.0
    %1329 = vmatpush1.msra.mxu0 0.0
    %1330 = vmatprep.subr.mxu0 0.0
    %1331 = vmatpush1.msra.mxu0 0.0
    %1332 = vmatprep.subr.mxu0 0.0
    %1333 = vmatpush1.msra.mxu0 0.0
    %1334 = vmatprep.subr.mxu0 0.0
    %1335 = vmatpush1.msra.mxu0 0.0
    %1336 = vmatprep.subr.mxu0 0.0
    %1337 = vmatpush1.msra.mxu0 0.0
    %1338 = vmatprep.subr.mxu0 0.0
    %1339 = vmatpush1.msra.mxu0 0.0
    %1340 = vmatprep.subr.mxu0 0.0
    %1341 = vmatpush1.msra.mxu0 0.0
    %1342 = vmatprep.mubr.f32.mxu0 0.0
    %1343 = vmatmul.mubr.f32.gmra.mrb[0].mxu0 %v1197
    %v1344 = vpop.f32.mrb[0].mxu0
    %v1345 = vadd.f32 0.0, %v1344
    %v1346 = vpop.f32.mrb[0].mxu0
    %v1347 = vadd.f32 0.0, %v1346
    %1348 = vdwg.mxu0
    %v1349 = vadd.f32 %v1203, %v1274
    %v1350 = vadd.f32 %v1204, %v1276
    %v1351 = vadd.f32 %v1205, %v1345
    %v1352 = vadd.f32 %v1206, %v1347
    %v1353 = vxor.u32 %v1349, 2147483648
    %v1354 = vmul.f32 %v1353, 1.442695
    %v1355 = vpow.pop %v1354
    %v1356 = vadd.f32 %v1355, 1.0
    %v1357 = vrcp.pop %v1356
    %v1358 = vmul.f32 1.0, %v1357
    %v1359 = vxor.u32 %v1350, 2147483648
    %v1360 = vmul.f32 %v1359, 1.442695
    %v1361 = vpow.pop %v1360
    %v1362 = vadd.f32 %v1361, 1.0
    %v1363 = vrcp.pop %v1362
    %v1364 = vmul.f32 1.0, %v1363
    %v1365 = vtanh.pop %v1351
    %v1366 = vxor.u32 %v1352, 2147483648
    %v1367 = vmul.f32 %v1366, 1.442695
    %v1368 = vpow.pop %v1367
    %v1369 = vadd.f32 %v1368, 1.0
    %v1370 = vrcp.pop %v1369
    %v1371 = vmul.f32 1.0, %v1370
    %v1372 = vmul.f32 %v1364, %v1195
    %v1373 = vmul.f32 %v1358, %v1365
    %v1374 = vadd.f32 %v1372, %v1373
    %v1375 = vtanh.pop %v1374
    %v1376 = vmul.f32 %v1371, %v1375
    %s1377 = sadd.s32 %s62, 6
    %v1378 = vstv %s1377
    %vm1379 = vcmp.eq.s32.totalorder %v61, %v1378
    %v1380 = vsel %vm1379, %v1376, %v1201
    %s1381 = scalar_lea.vmem [#allocation4], 224
    %v1382 = vld [vmem:[%s1381] sm:$0xff]
    %v1383 = vld [vmem:[%s1381 + $0x8] sm:$0xff]
    %v1384 = vld [vmem:[%s1381 + $0x10] sm:$0xff]
    %v1385 = vld [vmem:[%s1381 + $0x18] sm:$0xff]
    %1386 = vmatprep.subr.mxu0 %v71
    %1387 = vmatpush1.msra.mxu0 %v70
    %1388 = vmatprep.subr.mxu0 %v75
    %1389 = vmatpush1.msra.mxu0 %v74
    %1390 = vmatprep.subr.mxu0 %v79
    %1391 = vmatpush1.msra.mxu0 %v78
    %1392 = vmatprep.subr.mxu0 %v83
    %1393 = vmatpush1.msra.mxu0 %v82
    %1394 = vmatprep.subr.mxu0 %v87
    %1395 = vmatpush1.msra.mxu0 %v86
    %1396 = vmatprep.subr.mxu0 %v91
    %1397 = vmatpush1.msra.mxu0 %v90
    %1398 = vmatprep.subr.mxu0 %v95
    %1399 = vmatpush1.msra.mxu0 %v94
    %1400 = vmatprep.subr.mxu0 %v99
    %1401 = vmatpush1.msra.mxu0 %v98
    %1402 = vmatprep.subr.mxu0 %v103
    %1403 = vmatpush1.msra.mxu0 %v102
    %1404 = vmatprep.subr.mxu0 %v107
    %1405 = vmatpush1.msra.mxu0 %v106
    %1406 = vmatprep.subr.mxu0 %v111
    %1407 = vmatpush1.msra.mxu0 %v110
    %1408 = vmatprep.subr.mxu0 %v115
    %1409 = vmatpush1.msra.mxu0 %v114
    %1410 = vmatprep.subr.mxu0 %v119
    %1411 = vmatpush1.msra.mxu0 %v118
    %1412 = vmatprep.subr.mxu0 %v123
    %1413 = vmatpush1.msra.mxu0 %v122
    %1414 = vmatprep.subr.mxu0 %v127
    %1415 = vmatpush1.msra.mxu0 %v126
    %1416 = vmatprep.subr.mxu0 %v131
    %1417 = vmatpush1.msra.mxu0 %v130
    %1418 = vmatprep.subr.mxu0 0.0
    %1419 = vmatpush1.msra.mxu0 0.0
    %1420 = vmatprep.subr.mxu0 0.0
    %1421 = vmatpush1.msra.mxu0 0.0
    %1422 = vmatprep.subr.mxu0 0.0
    %1423 = vmatpush1.msra.mxu0 0.0
    %1424 = vmatprep.subr.mxu0 0.0
    %1425 = vmatpush1.msra.mxu0 0.0
    %1426 = vmatprep.subr.mxu0 0.0
    %1427 = vmatpush1.msra.mxu0 0.0
    %1428 = vmatprep.subr.mxu0 0.0
    %1429 = vmatpush1.msra.mxu0 0.0
    %1430 = vmatprep.subr.mxu0 0.0
    %1431 = vmatpush1.msra.mxu0 0.0
    %1432 = vmatprep.subr.mxu0 0.0
    %1433 = vmatpush1.msra.mxu0 0.0
    %1434 = vmatprep.subr.mxu0 0.0
    %1435 = vmatpush1.msra.mxu0 0.0
    %1436 = vmatprep.subr.mxu0 0.0
    %1437 = vmatpush1.msra.mxu0 0.0
    %1438 = vmatprep.subr.mxu0 0.0
    %1439 = vmatpush1.msra.mxu0 0.0
    %1440 = vmatprep.subr.mxu0 0.0
    %1441 = vmatpush1.msra.mxu0 0.0
    %1442 = vmatprep.subr.mxu0 0.0
    %1443 = vmatpush1.msra.mxu0 0.0
    %1444 = vmatprep.subr.mxu0 0.0
    %1445 = vmatpush1.msra.mxu0 0.0
    %1446 = vmatprep.subr.mxu0 0.0
    %1447 = vmatpush1.msra.mxu0 0.0
    %1448 = vmatprep.subr.mxu0 0.0
    %1449 = vmatpush1.msra.mxu0 0.0
    %1450 = vmatprep.mubr.f32.mxu0 0.0
    %1451 = vmatmul.mubr.f32.gmra.mrb[0].mxu0 %v1376
    %v1452 = vpop.f32.mrb[0].mxu0
    %v1453 = vadd.f32 0.0, %v1452
    %v1454 = vpop.f32.mrb[0].mxu0
    %v1455 = vadd.f32 0.0, %v1454
    %1456 = vdwg.mxu0
    %1457 = vmatprep.subr.mxu0 %v73
    %1458 = vmatpush1.msra.mxu0 %v72
    %1459 = vmatprep.subr.mxu0 %v77
    %1460 = vmatpush1.msra.mxu0 %v76
    %1461 = vmatprep.subr.mxu0 %v81
    %1462 = vmatpush1.msra.mxu0 %v80
    %1463 = vmatprep.subr.mxu0 %v85
    %1464 = vmatpush1.msra.mxu0 %v84
    %1465 = vmatprep.subr.mxu0 %v89
    %1466 = vmatpush1.msra.mxu0 %v88
    %1467 = vmatprep.subr.mxu0 %v93
    %1468 = vmatpush1.msra.mxu0 %v92
    %1469 = vmatprep.subr.mxu0 %v97
    %1470 = vmatpush1.msra.mxu0 %v96
    %1471 = vmatprep.subr.mxu0 %v101
    %1472 = vmatpush1.msra.mxu0 %v100
    %1473 = vmatprep.subr.mxu0 %v105
    %1474 = vmatpush1.msra.mxu0 %v104
    %1475 = vmatprep.subr.mxu0 %v109
    %1476 = vmatpush1.msra.mxu0 %v108
    %1477 = vmatprep.subr.mxu0 %v113
    %1478 = vmatpush1.msra.mxu0 %v112
    %1479 = vmatprep.subr.mxu0 %v117
    %1480 = vmatpush1.msra.mxu0 %v116
    %1481 = vmatprep.subr.mxu0 %v121
    %1482 = vmatpush1.msra.mxu0 %v120
    %1483 = vmatprep.subr.mxu0 %v125
    %1484 = vmatpush1.msra.mxu0 %v124
    %1485 = vmatprep.subr.mxu0 %v129
    %1486 = vmatpush1.msra.mxu0 %v128
    %1487 = vmatprep.subr.mxu0 %v133
    %1488 = vmatpush1.msra.mxu0 %v132
    %1489 = vmatprep.subr.mxu0 0.0
    %1490 = vmatpush1.msra.mxu0 0.0
    %1491 = vmatprep.subr.mxu0 0.0
    %1492 = vmatpush1.msra.mxu0 0.0
    %1493 = vmatprep.subr.mxu0 0.0
    %1494 = vmatpush1.msra.mxu0 0.0
    %1495 = vmatprep.subr.mxu0 0.0
    %1496 = vmatpush1.msra.mxu0 0.0
    %1497 = vmatprep.subr.mxu0 0.0
    %1498 = vmatpush1.msra.mxu0 0.0
    %1499 = vmatprep.subr.mxu0 0.0
    %1500 = vmatpush1.msra.mxu0 0.0
    %1501 = vmatprep.subr.mxu0 0.0
    %1502 = vmatpush1.msra.mxu0 0.0
    %1503 = vmatprep.subr.mxu0 0.0
    %1504 = vmatpush1.msra.mxu0 0.0
    %1505 = vmatprep.subr.mxu0 0.0
    %1506 = vmatpush1.msra.mxu0 0.0
    %1507 = vmatprep.subr.mxu0 0.0
    %1508 = vmatpush1.msra.mxu0 0.0
    %1509 = vmatprep.subr.mxu0 0.0
    %1510 = vmatpush1.msra.mxu0 0.0
    %1511 = vmatprep.subr.mxu0 0.0
    %1512 = vmatpush1.msra.mxu0 0.0
    %1513 = vmatprep.subr.mxu0 0.0
    %1514 = vmatpush1.msra.mxu0 0.0
    %1515 = vmatprep.subr.mxu0 0.0
    %1516 = vmatpush1.msra.mxu0 0.0
    %1517 = vmatprep.subr.mxu0 0.0
    %1518 = vmatpush1.msra.mxu0 0.0
    %1519 = vmatprep.subr.mxu0 0.0
    %1520 = vmatpush1.msra.mxu0 0.0
    %1521 = vmatprep.mubr.f32.mxu0 0.0
    %1522 = vmatmul.mubr.f32.gmra.mrb[0].mxu0 %v1376
    %v1523 = vpop.f32.mrb[0].mxu0
    %v1524 = vadd.f32 0.0, %v1523
    %v1525 = vpop.f32.mrb[0].mxu0
    %v1526 = vadd.f32 0.0, %v1525
    %1527 = vdwg.mxu0
    %v1528 = vadd.f32 %v1382, %v1453
    %v1529 = vadd.f32 %v1383, %v1455
    %v1530 = vadd.f32 %v1384, %v1524
    %v1531 = vadd.f32 %v1385, %v1526
    %v1532 = vxor.u32 %v1528, 2147483648
    %v1533 = vmul.f32 %v1532, 1.442695
    %v1534 = vpow.pop %v1533
    %v1535 = vadd.f32 %v1534, 1.0
    %v1536 = vrcp.pop %v1535
    %v1537 = vmul.f32 1.0, %v1536
    %v1538 = vxor.u32 %v1529, 2147483648
    %v1539 = vmul.f32 %v1538, 1.442695
    %v1540 = vpow.pop %v1539
    %v1541 = vadd.f32 %v1540, 1.0
    %v1542 = vrcp.pop %v1541
    %v1543 = vmul.f32 1.0, %v1542
    %v1544 = vtanh.pop %v1530
    %v1545 = vxor.u32 %v1531, 2147483648
    %v1546 = vmul.f32 %v1545, 1.442695
    %v1547 = vpow.pop %v1546
    %v1548 = vadd.f32 %v1547, 1.0
    %v1549 = vrcp.pop %v1548
    %v1550 = vmul.f32 1.0, %v1549
    %v1551 = vmul.f32 %v1543, %v1374
    %v1552 = vmul.f32 %v1537, %v1544
    %v1553 = vadd.f32 %v1551, %v1552
    %v1554 = vtanh.pop %v1553
    %v1555 = vmul.f32 %v1550, %v1554
    %s1556 = sadd.s32 %s62, 7
    %v1557 = vstv %s1556
    %vm1558 = vcmp.eq.s32.totalorder %v61, %v1557
    %v1559 = vsel %vm1558, %v1555, %v1380
    %1560 = vst [vmem:[#allocation2] sm:$0xff] %v1555
    %1561 = vst [vmem:[#allocation3] sm:$0xff] %v1553
    %1562 = vst [vmem:[#allocation9] sm:$0xff] %v1559
    // Predicated region
    $region34: #{tpu_custom_call.1} parent=1 // pred_check
      _
    $region35: #{tpu_custom_call.1} parent=1 // pred_check_branch
      %1564 = sbr.rel (0) target = $region37
    $region36: #{tpu_custom_call.1} parent=1 // pred_region
      %s1566 = ssub.s32 128, 128
      %1567 = vsyncadd [#allocation6], %s1566
      %s1569 = sshll.u32 [#allocation9], 4
      %s1570 = int_to_ptr.vmem [resolvable:$true] %s1569
      %1572 = dma.vmem_to_hbm [thread:$0]  %s1570, 128, %s5, [#allocation6]
    $region37: #{tpu_custom_call.1} parent=1 // pred_fallthru
      _
    // Predicated region
    $region38: #{tpu_custom_call.1} parent=1 // pred_check
      _
    $region39: #{tpu_custom_call.1} parent=1 // pred_check_branch
      %1574 = sbr.rel (0) target = $region41
    $region40: #{tpu_custom_call.1} parent=1 // pred_region
      %1575 = dma.done [#allocation6], 128
    $region41: #{tpu_custom_call.1} parent=1 // pred_fallthru
      _
    %1576 = vsyncpa [#allocation5], 1
    %1577 = vsyncpa [#allocation8], 1
    %1578 = vsyncpa [#allocation6], 1

</llo_original>
